<compile_context>
chip_gen: v7x
topology: tpu7x:2x2x1
jax: 0.10.0
libtpu: 0.0.40
codegen_flags: <defaults>
</compile_context>

<pallas_src>
import functools

import jax
import jax.numpy as jnp
from jax import lax
from jax.experimental import pallas as pl
from jax.experimental.pallas import tpu as pltpu


def _conv_bn_relu_kernel(x_ref, w_ref, gamma_ref, beta_ref, mask_ref, o_ref,
                         s_sum, s_ssq, *, KH, KW, Ho, Wo, Wp, stride, inv_m, eps):
    """Fused ConvBlock over grid=(2, N).

    Phase 0 (p==0): compute the conv for image n and accumulate per-channel batch
    sum / sumsq (masking the Wo..Wp "wrap" lanes of the wide layout).
    Phase 1 (p==1): recompute the conv, apply BN with batch stats + ReLU, store a
    lane-dense (Cout, Ho*Wp) tile.
    """
    phase = pl.program_id(0)
    n = pl.program_id(1)

    cout = w_ref.shape[1]
    cin = x_ref.shape[1]
    w_wide = Ho * Wp                      # wide output: row pitch = padded input width
    span = stride * (w_wide - 1) + 1

    # ---- conv for this image: implicit GEMM over the KH*KW taps (all in VMEM) ----
    x = x_ref[0]                          # (Cin, Lflat) bf16, whole padded image
    y = jnp.zeros((cout, w_wide), jnp.float32)
    for i in range(KH):                   # statically unrolled (KH*KW is small)
        for j in range(KW):
            start = i * Wp + j
            xs = lax.slice(x, (0, start), (cin, start + span), (1, stride))
            y = y + jnp.dot(w_ref[i * KW + j], xs,
                            preferred_element_type=jnp.float32)

    # ---- phase 0: accumulate batch statistics ----
    @pl.when(jnp.logical_and(phase == 0, n == 0))
    def _():
        s_sum[...] = jnp.zeros_like(s_sum)
        s_ssq[...] = jnp.zeros_like(s_ssq)

    @pl.when(phase == 0)
    def _():
        ym = y * mask_ref[...]            # zero out the invalid wrap columns
        s_sum[...] += jnp.sum(ym, axis=1, keepdims=True)
        s_ssq[...] += jnp.sum(ym * ym, axis=1, keepdims=True)

    # ---- phase 1: BN (biased batch variance) + ReLU, lane-dense store ----
    @pl.when(phase == 1)
    def _():
        mean = s_sum[...] * inv_m                                   # (Cout, 1)
        var = jnp.maximum(s_ssq[...] * inv_m - mean * mean, 0.0)
        scale = gamma_ref[...] * lax.rsqrt(var + eps)
        shift = beta_ref[...] - mean * scale
        o_ref[0] = jnp.maximum(y * scale + shift, 0.0)


def conv_block_forward(x, weight, bias, gamma, beta, *, stride=1, padding=0, eps=1e-5):
    """ConvBlock forward (bn=True, act=ReLU). x: (N, Cin, H, W) NCHW -> (N, Cout, Ho, Wo).

    `bias` is accepted for API parity but unused: a per-channel constant added before
    train-mode BatchNorm is cancelled exactly by the batch-mean subtraction.
    """
    del bias
    N, Cin, H, W = x.shape
    Cout, Cin_w, KH, KW = weight.shape
    assert Cin_w == Cin
    Ho = (H + 2 * padding - KH) // stride + 1
    Wo = (W + 2 * padding - KW) // stride + 1
    Hp, Wp = H + 2 * padding, W + 2 * padding
    w_wide = Ho * Wp

    # Flatten the zero-padded plane per (image, channel); pad the tail so every tap's
    # (possibly strided) slice stays in bounds. bf16 halves HBM/VMEM traffic.
    l_need = (KH - 1) * Wp + (KW - 1) + stride * (w_wide - 1) + 1
    l_flat = ((max(Hp * Wp, l_need) + 127) // 128) * 128
    xp = jnp.pad(x, ((0, 0), (0, 0), (padding, padding), (padding, padding)))
    xf = xp.reshape(N, Cin, Hp * Wp)
    xf = jnp.pad(xf, ((0, 0), (0, 0), (0, l_flat - Hp * Wp))).astype(jnp.bfloat16)

    # Per-tap weight slabs (KH*KW, Cout, Cin) in bf16; BN affine params as (Cout, 1).
    wt = weight.transpose(2, 3, 0, 1).reshape(KH * KW, Cout, Cin).astype(jnp.bfloat16)
    g2 = gamma.reshape(Cout, 1).astype(jnp.float32)
    b2 = beta.reshape(Cout, 1).astype(jnp.float32)
    # 1/0 mask over the wide output lanes: only columns wo < Wo are real outputs.
    mask = ((jnp.arange(w_wide) % Wp) < Wo).astype(jnp.float32).reshape(1, w_wide)

    kernel = functools.partial(
        _conv_bn_relu_kernel, KH=KH, KW=KW, Ho=Ho, Wo=Wo, Wp=Wp, stride=stride,
        inv_m=1.0 / float(N * Ho * Wo), eps=float(eps))

    out_wide = pl.pallas_call(
        kernel,
        out_shape=jax.ShapeDtypeStruct((N, Cout, w_wide), jnp.float32),
        grid=(2, N),                                  # (phase, image)
        in_specs=[
            pl.BlockSpec((1, Cin, l_flat), lambda p, n: (n, 0, 0)),
            pl.BlockSpec((KH * KW, Cout, Cin), lambda p, n: (0, 0, 0)),
            pl.BlockSpec((Cout, 1), lambda p, n: (0, 0)),
            pl.BlockSpec((Cout, 1), lambda p, n: (0, 0)),
            pl.BlockSpec((1, w_wide), lambda p, n: (0, 0)),
        ],
        # Output block n is only active (and fully written) in phase 1; during phase 0
        # the index pins block 0, which is not flushed until after it has been written.
        out_specs=pl.BlockSpec((1, Cout, w_wide), lambda p, n: (p * n, 0, 0)),
        scratch_shapes=[pltpu.VMEM((Cout, 1), jnp.float32),
                        pltpu.VMEM((Cout, 1), jnp.float32)],
        compiler_params=pltpu.CompilerParams(
            # TODO(synk): per-core partial stats would let the image axis shard across v7x's 2 TCs.
            dimension_semantics=("arbitrary", "arbitrary")),
    )(xf, wt, g2, b2, mask)

    # (N, Cout, Ho*Wp) -> (N, Cout, Ho, Wp) is a free reshape; crop the wrap columns.
    return out_wide.reshape(N, Cout, Ho, Wp)[:, :, :, :Wo]


def _reference(x, weight, bias, gamma, beta, *, stride, padding, eps=1e-5):
    """Pure-JAX reference of ConvBlock.forward (training-mode BN, biased variance)."""
    y = lax.conv_general_dilated(
        x.astype(jnp.float32), weight.astype(jnp.float32),
        window_strides=(stride, stride),
        padding=[(padding, padding), (padding, padding)],
        dimension_numbers=("NCHW", "OIHW", "NCHW"),
    ) + bias.reshape(1, -1, 1, 1)
    mean = y.mean(axis=(0, 2, 3), keepdims=True)
    var = ((y - mean) ** 2).mean(axis=(0, 2, 3), keepdims=True)
    yn = (y - mean) / jnp.sqrt(var + eps)
    yn = yn * gamma.reshape(1, -1, 1, 1) + beta.reshape(1, -1, 1, 1)
    return jnp.maximum(yn, 0.0)


if __name__ == "__main__":
    # ConvBlock(in_channels=4, out_channels=8, kernel_size=3, stride=1, padding=1)
    N, Cin, H, W = 2, 4, 16, 16
    Cout, KH, KW = 8, 3, 3
    stride, padding = 1, 1

    key = jax.random.PRNGKey(0)
    kx, kw, kb = jax.random.split(key, 3)
    x = jax.random.normal(kx, (N, Cin, H, W), dtype=jnp.float32)

    # Deterministic parameter init (shapes per nn.Conv2d / nn.BatchNorm2d defaults).
    fan_in = Cin * KH * KW
    bound = 1.0 / (fan_in ** 0.5)
    weight = jax.random.uniform(kw, (Cout, Cin, KH, KW), jnp.float32, -bound, bound)
    bias = jax.random.uniform(kb, (Cout,), jnp.float32, -bound, bound)
    gamma = jnp.ones((Cout,), jnp.float32)     # BatchNorm2d default weight
    beta = jnp.zeros((Cout,), jnp.float32)     # BatchNorm2d default bias

    out = conv_block_forward(x, weight, bias, gamma, beta,
                             stride=stride, padding=padding)
    out = jax.block_until_ready(out)
    assert out.shape == (N, Cout, H, W)

    # Tight check against a reference run on the same bf16-quantized conv operands
    # (isolates kernel correctness from the requested mixed-precision cast).
    xq = x.astype(jnp.bfloat16).astype(jnp.float32)
    wq = weight.astype(jnp.bfloat16).astype(jnp.float32)
    ref_q = _reference(xq, wq, bias, gamma, beta, stride=stride, padding=padding)
    assert jnp.allclose(out, ref_q, atol=1e-3, rtol=1e-3), (
        f"max abs err vs bf16-input ref: {jnp.max(jnp.abs(out - ref_q))}")

    # Looser sanity check against the pure-f32 module: BN renormalization keeps the
    # bf16 input cast's effect small.
    ref = _reference(x, weight, bias, gamma, beta, stride=stride, padding=padding)
    assert jnp.allclose(out, ref, atol=5e-2, rtol=5e-2), (
        f"max abs err vs f32 ref: {jnp.max(jnp.abs(out - ref))}")

    print("KERNEL_OK")
</pallas_src>

<mosaic_0001>
module attributes {stable_mosaic.version = 11 : i64} {
  func.func @_conv_bn_relu_kernel(%arg0: i32, %arg1: i32, %arg2: memref<1x4x384xbf16, #tpu.memory_space<vmem>>, %arg3: memref<9x8x4xbf16, #tpu.memory_space<vmem>>, %arg4: memref<8x1xf32, #tpu.memory_space<vmem>>, %arg5: memref<8x1xf32, #tpu.memory_space<vmem>>, %arg6: memref<1x288xf32, #tpu.memory_space<vmem>>, %arg7: memref<1x8x288xf32, #tpu.memory_space<vmem>>, %arg8: memref<8x1xf32, #tpu.memory_space<vmem>>, %arg9: memref<8x1xf32, #tpu.memory_space<vmem>>) attributes {dimension_semantics = [#tpu.dimension_semantics<arbitrary>, #tpu.dimension_semantics<arbitrary>], iteration_bounds = array<i64: 2, 2>, scalar_prefetch = 0 : i64, scratch_operands = 2 : i64, tpu.core_type = #tpu.core_type<tc>, window_params = [{transform_indices = @transform_0, window_bounds = array<i64: 1, 4, 384>}, {pipeline_mode = #tpu.pipeline_mode<synchronous>, transform_indices = @transform_1, window_bounds = array<i64: 9, 8, 4>}, {pipeline_mode = #tpu.pipeline_mode<synchronous>, transform_indices = @transform_2, window_bounds = array<i64: 8, 1>}, {pipeline_mode = #tpu.pipeline_mode<synchronous>, transform_indices = @transform_3, window_bounds = array<i64: 8, 1>}, {pipeline_mode = #tpu.pipeline_mode<synchronous>, transform_indices = @transform_4, window_bounds = array<i64: 1, 288>}, {transform_indices = @transform_5, window_bounds = array<i64: 1, 8, 288>}]} {
    %c0 = arith.constant 0 : index
    %c0_0 = arith.constant 0 : index
    %c0_1 = arith.constant 0 : index
    %0 = vector.load %arg2[%c0, %c0_0, %c0_1] : memref<1x4x384xbf16, #tpu.memory_space<vmem>>, vector<1x4x384xbf16>
    %1 = vector.shape_cast %0 : vector<1x4x384xbf16> to vector<4x384xbf16>
    %cst = arith.constant 0.000000e+00 : f32
    %2 = vector.broadcast %cst : f32 to vector<8x288xf32>
    %3 = vector.extract_strided_slice %1 {offsets = [0, 0], sizes = [4, 288], strides = [1, 1]} : vector<4x384xbf16> to vector<4x288xbf16>
    %c0_2 = arith.constant 0 : index
    %c0_3 = arith.constant 0 : index
    %c0_4 = arith.constant 0 : index
    %4 = vector.load %arg3[%c0_2, %c0_3, %c0_4] : memref<9x8x4xbf16, #tpu.memory_space<vmem>>, vector<1x8x4xbf16>
    %5 = vector.shape_cast %4 : vector<1x8x4xbf16> to vector<8x4xbf16>
    %cst_5 = arith.constant dense<0.000000e+00> : vector<8x288xf32>
    %6 = tpu.matmul %5, %3, %cst_5 {dimension_numbers = #tpu.dot_dimension_numbers<[1], [0], [0], [1], [0, 0, 1, 1], [], []>} : vector<8x4xbf16>, vector<4x288xbf16>, vector<8x288xf32> -> vector<8x288xf32>
    %7 = arith.addf %2, %6 : vector<8x288xf32>
    %8 = vector.extract_strided_slice %1 {offsets = [0, 1], sizes = [4, 288], strides = [1, 1]} : vector<4x384xbf16> to vector<4x288xbf16>
    %c1 = arith.constant 1 : index
    %c0_6 = arith.constant 0 : index
    %c0_7 = arith.constant 0 : index
    %9 = vector.load %arg3[%c1, %c0_6, %c0_7] : memref<9x8x4xbf16, #tpu.memory_space<vmem>>, vector<1x8x4xbf16>
    %10 = vector.shape_cast %9 : vector<1x8x4xbf16> to vector<8x4xbf16>
    %cst_8 = arith.constant dense<0.000000e+00> : vector<8x288xf32>
    %11 = tpu.matmul %10, %8, %cst_8 {dimension_numbers = #tpu.dot_dimension_numbers<[1], [0], [0], [1], [0, 0, 1, 1], [], []>} : vector<8x4xbf16>, vector<4x288xbf16>, vector<8x288xf32> -> vector<8x288xf32>
    %12 = arith.addf %7, %11 : vector<8x288xf32>
    %13 = vector.extract_strided_slice %1 {offsets = [0, 2], sizes = [4, 288], strides = [1, 1]} : vector<4x384xbf16> to vector<4x288xbf16>
    %c2 = arith.constant 2 : index
    %c0_9 = arith.constant 0 : index
    %c0_10 = arith.constant 0 : index
    %14 = vector.load %arg3[%c2, %c0_9, %c0_10] : memref<9x8x4xbf16, #tpu.memory_space<vmem>>, vector<1x8x4xbf16>
    %15 = vector.shape_cast %14 : vector<1x8x4xbf16> to vector<8x4xbf16>
    %cst_11 = arith.constant dense<0.000000e+00> : vector<8x288xf32>
    %16 = tpu.matmul %15, %13, %cst_11 {dimension_numbers = #tpu.dot_dimension_numbers<[1], [0], [0], [1], [0, 0, 1, 1], [], []>} : vector<8x4xbf16>, vector<4x288xbf16>, vector<8x288xf32> -> vector<8x288xf32>
    %17 = arith.addf %12, %16 : vector<8x288xf32>
    %18 = vector.extract_strided_slice %1 {offsets = [0, 18], sizes = [4, 288], strides = [1, 1]} : vector<4x384xbf16> to vector<4x288xbf16>
    %c3 = arith.constant 3 : index
    %c0_12 = arith.constant 0 : index
    %c0_13 = arith.constant 0 : index
    %19 = vector.load %arg3[%c3, %c0_12, %c0_13] : memref<9x8x4xbf16, #tpu.memory_space<vmem>>, vector<1x8x4xbf16>
    %20 = vector.shape_cast %19 : vector<1x8x4xbf16> to vector<8x4xbf16>
    %cst_14 = arith.constant dense<0.000000e+00> : vector<8x288xf32>
    %21 = tpu.matmul %20, %18, %cst_14 {dimension_numbers = #tpu.dot_dimension_numbers<[1], [0], [0], [1], [0, 0, 1, 1], [], []>} : vector<8x4xbf16>, vector<4x288xbf16>, vector<8x288xf32> -> vector<8x288xf32>
    %22 = arith.addf %17, %21 : vector<8x288xf32>
    %23 = vector.extract_strided_slice %1 {offsets = [0, 19], sizes = [4, 288], strides = [1, 1]} : vector<4x384xbf16> to vector<4x288xbf16>
    %c4 = arith.constant 4 : index
    %c0_15 = arith.constant 0 : index
    %c0_16 = arith.constant 0 : index
    %24 = vector.load %arg3[%c4, %c0_15, %c0_16] : memref<9x8x4xbf16, #tpu.memory_space<vmem>>, vector<1x8x4xbf16>
    %25 = vector.shape_cast %24 : vector<1x8x4xbf16> to vector<8x4xbf16>
    %cst_17 = arith.constant dense<0.000000e+00> : vector<8x288xf32>
    %26 = tpu.matmul %25, %23, %cst_17 {dimension_numbers = #tpu.dot_dimension_numbers<[1], [0], [0], [1], [0, 0, 1, 1], [], []>} : vector<8x4xbf16>, vector<4x288xbf16>, vector<8x288xf32> -> vector<8x288xf32>
    %27 = arith.addf %22, %26 : vector<8x288xf32>
    %28 = vector.extract_strided_slice %1 {offsets = [0, 20], sizes = [4, 288], strides = [1, 1]} : vector<4x384xbf16> to vector<4x288xbf16>
    %c5 = arith.constant 5 : index
    %c0_18 = arith.constant 0 : index
    %c0_19 = arith.constant 0 : index
    %29 = vector.load %arg3[%c5, %c0_18, %c0_19] : memref<9x8x4xbf16, #tpu.memory_space<vmem>>, vector<1x8x4xbf16>
    %30 = vector.shape_cast %29 : vector<1x8x4xbf16> to vector<8x4xbf16>
    %cst_20 = arith.constant dense<0.000000e+00> : vector<8x288xf32>
    %31 = tpu.matmul %30, %28, %cst_20 {dimension_numbers = #tpu.dot_dimension_numbers<[1], [0], [0], [1], [0, 0, 1, 1], [], []>} : vector<8x4xbf16>, vector<4x288xbf16>, vector<8x288xf32> -> vector<8x288xf32>
    %32 = arith.addf %27, %31 : vector<8x288xf32>
    %33 = vector.extract_strided_slice %1 {offsets = [0, 36], sizes = [4, 288], strides = [1, 1]} : vector<4x384xbf16> to vector<4x288xbf16>
    %c6 = arith.constant 6 : index
    %c0_21 = arith.constant 0 : index
    %c0_22 = arith.constant 0 : index
    %34 = vector.load %arg3[%c6, %c0_21, %c0_22] : memref<9x8x4xbf16, #tpu.memory_space<vmem>>, vector<1x8x4xbf16>
    %35 = vector.shape_cast %34 : vector<1x8x4xbf16> to vector<8x4xbf16>
    %cst_23 = arith.constant dense<0.000000e+00> : vector<8x288xf32>
    %36 = tpu.matmul %35, %33, %cst_23 {dimension_numbers = #tpu.dot_dimension_numbers<[1], [0], [0], [1], [0, 0, 1, 1], [], []>} : vector<8x4xbf16>, vector<4x288xbf16>, vector<8x288xf32> -> vector<8x288xf32>
    %37 = arith.addf %32, %36 : vector<8x288xf32>
    %38 = vector.extract_strided_slice %1 {offsets = [0, 37], sizes = [4, 288], strides = [1, 1]} : vector<4x384xbf16> to vector<4x288xbf16>
    %c7 = arith.constant 7 : index
    %c0_24 = arith.constant 0 : index
    %c0_25 = arith.constant 0 : index
    %39 = vector.load %arg3[%c7, %c0_24, %c0_25] : memref<9x8x4xbf16, #tpu.memory_space<vmem>>, vector<1x8x4xbf16>
    %40 = vector.shape_cast %39 : vector<1x8x4xbf16> to vector<8x4xbf16>
    %cst_26 = arith.constant dense<0.000000e+00> : vector<8x288xf32>
    %41 = tpu.matmul %40, %38, %cst_26 {dimension_numbers = #tpu.dot_dimension_numbers<[1], [0], [0], [1], [0, 0, 1, 1], [], []>} : vector<8x4xbf16>, vector<4x288xbf16>, vector<8x288xf32> -> vector<8x288xf32>
    %42 = arith.addf %37, %41 : vector<8x288xf32>
    %43 = vector.extract_strided_slice %1 {offsets = [0, 38], sizes = [4, 288], strides = [1, 1]} : vector<4x384xbf16> to vector<4x288xbf16>
    %c8 = arith.constant 8 : index
    %c0_27 = arith.constant 0 : index
    %c0_28 = arith.constant 0 : index
    %44 = vector.load %arg3[%c8, %c0_27, %c0_28] : memref<9x8x4xbf16, #tpu.memory_space<vmem>>, vector<1x8x4xbf16>
    %45 = vector.shape_cast %44 : vector<1x8x4xbf16> to vector<8x4xbf16>
    %cst_29 = arith.constant dense<0.000000e+00> : vector<8x288xf32>
    %46 = tpu.matmul %45, %43, %cst_29 {dimension_numbers = #tpu.dot_dimension_numbers<[1], [0], [0], [1], [0, 0, 1, 1], [], []>} : vector<8x4xbf16>, vector<4x288xbf16>, vector<8x288xf32> -> vector<8x288xf32>
    %47 = arith.addf %42, %46 : vector<8x288xf32>
    %c0_i32 = arith.constant 0 : i32
    %48 = arith.cmpi eq, %arg0, %c0_i32 : i32
    %c0_i32_30 = arith.constant 0 : i32
    %49 = arith.cmpi eq, %arg1, %c0_i32_30 : i32
    %50 = arith.andi %48, %49 : i1
    %51 = arith.extui %50 : i1 to i32
    %c0_i32_31 = arith.constant 0 : i32
    %52 = arith.cmpi ne, %51, %c0_i32_31 : i32
    scf.if %52 {
      %cst_35 = arith.constant 0.000000e+00 : f32
      %59 = vector.broadcast %cst_35 : f32 to vector<8x1xf32>
      %c0_36 = arith.constant 0 : index
      %c0_37 = arith.constant 0 : index
      %60 = vector.load %arg8[%c0_36, %c0_37] : memref<8x1xf32, #tpu.memory_space<vmem>>, vector<8x1xf32>
      tpu.vector_store %arg8[%c0_36, %c0_37], %59 {strides = array<i32>} : memref<8x1xf32, #tpu.memory_space<vmem>>, vector<8x1xf32>,
      %cst_38 = arith.constant 0.000000e+00 : f32
      %61 = vector.broadcast %cst_38 : f32 to vector<8x1xf32>
      %c0_39 = arith.constant 0 : index
      %c0_40 = arith.constant 0 : index
      %62 = vector.load %arg9[%c0_39, %c0_40] : memref<8x1xf32, #tpu.memory_space<vmem>>, vector<8x1xf32>
      tpu.vector_store %arg9[%c0_39, %c0_40], %61 {strides = array<i32>} : memref<8x1xf32, #tpu.memory_space<vmem>>, vector<8x1xf32>,
    } else {
    }
    %c0_i32_32 = arith.constant 0 : i32
    %53 = arith.cmpi eq, %arg0, %c0_i32_32 : i32
    %54 = arith.extui %53 : i1 to i32
    %c0_i32_33 = arith.constant 0 : i32
    %55 = arith.cmpi ne, %54, %c0_i32_33 : i32
    scf.if %55 {
      %c0_35 = arith.constant 0 : index
      %c0_36 = arith.constant 0 : index
      %59 = vector.load %arg6[%c0_35, %c0_36] : memref<1x288xf32, #tpu.memory_space<vmem>>, vector<1x288xf32>
      %60 = vector.broadcast %59 : vector<1x288xf32> to vector<8x288xf32>
      %61 = arith.mulf %47, %60 : vector<8x288xf32>
      %c0_37 = arith.constant 0 : index
      %c0_38 = arith.constant 0 : index
      %62 = vector.load %arg8[%c0_37, %c0_38] : memref<8x1xf32, #tpu.memory_space<vmem>>, vector<8x1xf32>
      %cst_39 = arith.constant dense<0.000000e+00> : vector<8xf32>
      %63 = vector.multi_reduction <add>, %61, %cst_39 [1] : vector<8x288xf32> to vector<8xf32>
      %64 = vector.shape_cast %63 : vector<8xf32> to vector<8x1xf32>
      %65 = arith.addf %62, %64 : vector<8x1xf32>
      %c0_40 = arith.constant 0 : index
      %c0_41 = arith.constant 0 : index
      %66 = vector.load %arg8[%c0_40, %c0_41] : memref<8x1xf32, #tpu.memory_space<vmem>>, vector<8x1xf32>
      tpu.vector_store %arg8[%c0_40, %c0_41], %65 {strides = array<i32>} : memref<8x1xf32, #tpu.memory_space<vmem>>, vector<8x1xf32>,
      %c0_42 = arith.constant 0 : index
      %c0_43 = arith.constant 0 : index
      %67 = vector.load %arg9[%c0_42, %c0_43] : memref<8x1xf32, #tpu.memory_space<vmem>>, vector<8x1xf32>
      %68 = arith.mulf %61, %61 : vector<8x288xf32>
      %cst_44 = arith.constant dense<0.000000e+00> : vector<8xf32>
      %69 = vector.multi_reduction <add>, %68, %cst_44 [1] : vector<8x288xf32> to vector<8xf32>
      %70 = vector.shape_cast %69 : vector<8xf32> to vector<8x1xf32>
      %71 = arith.addf %67, %70 : vector<8x1xf32>
      %c0_45 = arith.constant 0 : index
      %c0_46 = arith.constant 0 : index
      %72 = vector.load %arg9[%c0_45, %c0_46] : memref<8x1xf32, #tpu.memory_space<vmem>>, vector<8x1xf32>
      tpu.vector_store %arg9[%c0_45, %c0_46], %71 {strides = array<i32>} : memref<8x1xf32, #tpu.memory_space<vmem>>, vector<8x1xf32>,
    } else {
    }
    %c1_i32 = arith.constant 1 : i32
    %56 = arith.cmpi eq, %arg0, %c1_i32 : i32
    %57 = arith.extui %56 : i1 to i32
    %c0_i32_34 = arith.constant 0 : i32
    %58 = arith.cmpi ne, %57, %c0_i32_34 : i32
    scf.if %58 {
      %c0_35 = arith.constant 0 : index
      %c0_36 = arith.constant 0 : index
      %59 = vector.load %arg8[%c0_35, %c0_36] : memref<8x1xf32, #tpu.memory_space<vmem>>, vector<8x1xf32>
      %cst_37 = arith.constant 0.001953125 : f32
      %60 = vector.broadcast %cst_37 : f32 to vector<8x1xf32>
      %61 = arith.mulf %59, %60 : vector<8x1xf32>
      %c0_38 = arith.constant 0 : index
      %c0_39 = arith.constant 0 : index
      %62 = vector.load %arg9[%c0_38, %c0_39] : memref<8x1xf32, #tpu.memory_space<vmem>>, vector<8x1xf32>
      %cst_40 = arith.constant 0.001953125 : f32
      %63 = vector.broadcast %cst_40 : f32 to vector<8x1xf32>
      %64 = arith.mulf %62, %63 : vector<8x1xf32>
      %65 = arith.mulf %61, %61 : vector<8x1xf32>
      %66 = arith.subf %64, %65 : vector<8x1xf32>
      %cst_41 = arith.constant 0.000000e+00 : f32
      %67 = vector.broadcast %cst_41 : f32 to vector<8x1xf32>
      %68 = arith.maximumf %66, %67 : vector<8x1xf32>
      %c0_42 = arith.constant 0 : index
      %c0_43 = arith.constant 0 : index
      %69 = vector.load %arg4[%c0_42, %c0_43] : memref<8x1xf32, #tpu.memory_space<vmem>>, vector<8x1xf32>
      %cst_44 = arith.constant 9.99999974E-6 : f32
      %70 = vector.broadcast %cst_44 : f32 to vector<8x1xf32>
      %71 = arith.addf %68, %70 : vector<8x1xf32>
      %72 = math.rsqrt %71 : vector<8x1xf32>
      %73 = arith.mulf %69, %72 : vector<8x1xf32>
      %c0_45 = arith.constant 0 : index
      %c0_46 = arith.constant 0 : index
      %74 = vector.load %arg5[%c0_45, %c0_46] : memref<8x1xf32, #tpu.memory_space<vmem>>, vector<8x1xf32>
      %75 = arith.mulf %61, %73 : vector<8x1xf32>
      %76 = arith.subf %74, %75 : vector<8x1xf32>
      %77 = vector.broadcast %73 : vector<8x1xf32> to vector<8x288xf32>
      %78 = arith.mulf %47, %77 : vector<8x288xf32>
      %79 = vector.broadcast %76 : vector<8x1xf32> to vector<8x288xf32>
      %80 = arith.addf %78, %79 : vector<8x288xf32>
      %cst_47 = arith.constant 0.000000e+00 : f32
      %81 = vector.broadcast %cst_47 : f32 to vector<8x288xf32>
      %82 = arith.maximumf %80, %81 : vector<8x288xf32>
      %c0_48 = arith.constant 0 : index
      %c0_49 = arith.constant 0 : index
      %c0_50 = arith.constant 0 : index
      %83 = vector.load %arg7[%c0_48, %c0_49, %c0_50] : memref<1x8x288xf32, #tpu.memory_space<vmem>>, vector<1x8x288xf32>
      %84 = vector.shape_cast %83 : vector<1x8x288xf32> to vector<8x288xf32>
      %85 = vector.shape_cast %82 : vector<8x288xf32> to vector<1x8x288xf32>
      tpu.vector_store %arg7[%c0_48, %c0_49, %c0_50], %85 {strides = array<i32>} : memref<1x8x288xf32, #tpu.memory_space<vmem>>, vector<1x8x288xf32>,
    } else {
    }
    return
  }
  func.func @transform_0(%arg0: i32, %arg1: i32) -> (i32, i32, i32) {
    %c0_i32 = arith.constant 0 : i32
    %c0_i32_0 = arith.constant 0 : i32
    %c0_i32_1 = arith.constant 0 : i32
    return %arg1, %c0_i32, %c0_i32_0 : i32, i32, i32
  }
  func.func @transform_1(%arg0: i32, %arg1: i32) -> (i32, i32, i32) {
    %c0_i32 = arith.constant 0 : i32
    %c0_i32_0 = arith.constant 0 : i32
    %c0_i32_1 = arith.constant 0 : i32
    %c0_i32_2 = arith.constant 0 : i32
    return %c0_i32, %c0_i32_0, %c0_i32_1 : i32, i32, i32
  }
  func.func @transform_2(%arg0: i32, %arg1: i32) -> (i32, i32) {
    %c0_i32 = arith.constant 0 : i32
    %c0_i32_0 = arith.constant 0 : i32
    %c0_i32_1 = arith.constant 0 : i32
    return %c0_i32, %c0_i32_0 : i32, i32
  }
  func.func @transform_3(%arg0: i32, %arg1: i32) -> (i32, i32) {
    %c0_i32 = arith.constant 0 : i32
    %c0_i32_0 = arith.constant 0 : i32
    %c0_i32_1 = arith.constant 0 : i32
    return %c0_i32, %c0_i32_0 : i32, i32
  }
  func.func @transform_4(%arg0: i32, %arg1: i32) -> (i32, i32) {
    %c0_i32 = arith.constant 0 : i32
    %c0_i32_0 = arith.constant 0 : i32
    %c0_i32_1 = arith.constant 0 : i32
    return %c0_i32, %c0_i32_0 : i32, i32
  }
  func.func @transform_5(%arg0: i32, %arg1: i32) -> (i32, i32, i32) {
    %0 = arith.muli %arg0, %arg1 : i32
    %c0_i32 = arith.constant 0 : i32
    %c0_i32_0 = arith.constant 0 : i32
    %c0_i32_1 = arith.constant 0 : i32
    return %0, %c0_i32, %c0_i32_0 : i32, i32, i32
  }
}

</mosaic_0001>

<llo_original>
// kernel: tpu_custom_call.1
$region0: #{tpu_custom_call.1}
  #allocation0 [shape = 'u32[]', space=smem, size = 0x4, offset = 0x4, fixed_abs, tag = 'smem constant byte address 0x4 - core index']
  #allocation1 [shape = 'u32[144,128]{1,0:T(1,128)}', space=vmem, size = 0x12000, scoped, tag = 'internal scratch']
  #allocation2 [shape = 'f32[8,1]{1,0:T(8,128)}', space=vmem, size = 0x1000, scoped, tag = 'scratch operand']
  #allocation3 [shape = 'f32[8,1]{1,0:T(8,128)}', space=vmem, size = 0x1000, scoped, tag = 'scratch operand']
  %s0 = inlined_call_operand.vmem [shape: bf16[2,4,384], index: 0, kind: input, shape index: {}]
  %s1 = inlined_call_operand.vmem [shape: bf16[9,8,4], index: 1, kind: input, shape index: {}]
  %s2 = inlined_call_operand.vmem [shape: f32[8,1], index: 2, kind: input, shape index: {}]
  %s3 = inlined_call_operand.vmem [shape: f32[8,1], index: 3, kind: input, shape index: {}]
  %s4 = inlined_call_operand.vmem [shape: f32[1,288], index: 4, kind: input, shape index: {}]
  %s5 = inlined_call_operand.hbm [shape: f32[2,8,288], index: 5, kind: output, shape index: {}]
  %s6 = sld [smem:[#allocation0]]
  $region65: #{tpu_custom_call.1} parent=0
    _
  %s8 = ssub.s32 1, %s6
  %s9 = scalar_select 0, %s8, %s6
  $region1: #{tpu_custom_call.1} parent=0
    #allocation4 [shape = 'u8[24576]{0}', space=vmem, size = 0x6000, scoped, tag = 'output window, operand 0']
    #allocation5 [shape = 's32[2]{0}', space=sflag, size = 0x8, scoped, tag = 'scoped memory for tpu_custom_call.1']
    %10 = vsyncpa [#allocation5], 0
    %s11 = scalar_lea.sflag [#allocation5], 1
    %12 = vsyncpa %s11, 0
    loop: start=0, step=1, limit=6
    $region2: #{tpu_custom_call.1} parent=1 // loop_pre_header
      _
    $region3: #{tpu_custom_call.1} parent=1 // loop_header
      %s14 = sphi 0, %s18
      %p15 = scmp.ge.s32.totalorder %s14, 6
      %s21 = sphi 0, %s33
      %s22 = sphi 0, %s29
      %s23 = sphi 0, %s21
      %s24 = sphi 0, %s22
      %s25 = sphi 0, %s23
      %s26 = sphi 0, %s24
      %s36 = sphi 0, %s38
      %s39 = sphi 0, %s36
      %s40 = sphi 0, %s39
      %s56 = sphi 0, %s40
      %s60 = sphi 0, %s60
      %s62 = sphi 0, %s60
      %s63 = sphi 0, %s62
      %s77 = sphi 0, %s63
      %s81 = sphi 0, %s81
      %s83 = sphi 0, %s81
      %s84 = sphi 0, %s83
      %s98 = sphi 0, %s84
      %s102 = sphi 0, %s102
      %s104 = sphi 0, %s102
      %s105 = sphi 0, %s104
      %s119 = sphi 0, %s105
      %s123 = sphi 0, %s123
      %s125 = sphi 0, %s123
      %s126 = sphi 0, %s125
      %s140 = sphi 0, %s126
      %s148 = sphi 0, %s150
      %s151 = sphi 0, %s148
      %s152 = sphi 0, %s151
      %s168 = sphi 0, %s152
    $region4: #{tpu_custom_call.1} parent=1 // loop_header_branch
      %17 = sbr.rel (%p15) target = $region8
    $region5: #{tpu_custom_call.1} parent=1 // loop_body
      %s19 = ssub.s32 %s14, 1
      %s20 = ssub.s32 %s14, 2
      %s27 = sadd.s32 1, %s22
      %p28 = scmp.ge.s32.totalorder %s27, 2
      %s29 = scalar_select %p28, 0, %s27
      %s30 = sadd.s32 1, %s21
      %s31 = scalar_select %p28, %s30, %s21
      %p32 = scmp.ge.s32.totalorder %s31, 2
      %s33 = scalar_select %p32, 0, %s31
      %s34 = ssub.s32 %s22, %s29
      %p35 = scmp.eq.s32.totalorder %s34, 0
      %s37 = sadd.s32 %s36, 1
      %s38 = scalar_select %p35, %s36, %s37
      %p41 = pneg %p35
      %p42 = scmp.eq.s32.totalorder %s14, 3
      %p43 = por %p41, %p42
      %p44 = scmp.ne.s32.totalorder %s36, %s39
      %p45 = scmp.eq.s32.totalorder %s14, 0
      %p46 = por %p44, %p45
      %p47 = scmp.ne.s32.totalorder %s36, %s39
      %p48 = scmp.eq.s32.totalorder %s19, 3
      %p49 = por %p47, %p48
      %p50 = scmp.ne.s32.totalorder %s39, %s40
      %p51 = scmp.eq.s32.totalorder %s19, 0
      %p52 = por %p50, %p51
      %p53 = scmp.ne.s32.totalorder %s39, %s40
      %p54 = scmp.eq.s32.totalorder %s20, 3
      %p55 = por %p53, %p54
      %p57 = scmp.ne.s32.totalorder %s40, %s56
      %p58 = scmp.eq.s32.totalorder %s20, 0
      %p59 = por %p57, %p58
      %s61 = sadd.s32 %s60, 1
      %p64 = scmp.eq.s32.totalorder %s14, 3
      %p65 = scmp.ne.s32.totalorder %s60, %s62
      %p66 = scmp.eq.s32.totalorder %s14, 0
      %p67 = por %p65, %p66
      %p68 = scmp.ne.s32.totalorder %s60, %s62
      %p69 = scmp.eq.s32.totalorder %s19, 3
      %p70 = por %p68, %p69
      %p71 = scmp.ne.s32.totalorder %s62, %s63
      %p72 = scmp.eq.s32.totalorder %s19, 0
      %p73 = por %p71, %p72
      %p74 = scmp.ne.s32.totalorder %s62, %s63
      %p75 = scmp.eq.s32.totalorder %s20, 3
      %p76 = por %p74, %p75
      %p78 = scmp.ne.s32.totalorder %s63, %s77
      %p79 = scmp.eq.s32.totalorder %s20, 0
      %p80 = por %p78, %p79
      %s82 = sadd.s32 %s81, 1
      %p85 = scmp.eq.s32.totalorder %s14, 3
      %p86 = scmp.ne.s32.totalorder %s81, %s83
      %p87 = scmp.eq.s32.totalorder %s14, 0
      %p88 = por %p86, %p87
      %p89 = scmp.ne.s32.totalorder %s81, %s83
      %p90 = scmp.eq.s32.totalorder %s19, 3
      %p91 = por %p89, %p90
      %p92 = scmp.ne.s32.totalorder %s83, %s84
      %p93 = scmp.eq.s32.totalorder %s19, 0
      %p94 = por %p92, %p93
      %p95 = scmp.ne.s32.totalorder %s83, %s84
      %p96 = scmp.eq.s32.totalorder %s20, 3
      %p97 = por %p95, %p96
      %p99 = scmp.ne.s32.totalorder %s84, %s98
      %p100 = scmp.eq.s32.totalorder %s20, 0
      %p101 = por %p99, %p100
      %s103 = sadd.s32 %s102, 1
      %p106 = scmp.eq.s32.totalorder %s14, 3
      %p107 = scmp.ne.s32.totalorder %s102, %s104
      %p108 = scmp.eq.s32.totalorder %s14, 0
      %p109 = por %p107, %p108
      %p110 = scmp.ne.s32.totalorder %s102, %s104
      %p111 = scmp.eq.s32.totalorder %s19, 3
      %p112 = por %p110, %p111
      %p113 = scmp.ne.s32.totalorder %s104, %s105
      %p114 = scmp.eq.s32.totalorder %s19, 0
      %p115 = por %p113, %p114
      %p116 = scmp.ne.s32.totalorder %s104, %s105
      %p117 = scmp.eq.s32.totalorder %s20, 3
      %p118 = por %p116, %p117
      %p120 = scmp.ne.s32.totalorder %s105, %s119
      %p121 = scmp.eq.s32.totalorder %s20, 0
      %p122 = por %p120, %p121
      %s124 = sadd.s32 %s123, 1
      %p127 = scmp.eq.s32.totalorder %s14, 3
      %p128 = scmp.ne.s32.totalorder %s123, %s125
      %p129 = scmp.eq.s32.totalorder %s14, 0
      %p130 = por %p128, %p129
      %p131 = scmp.ne.s32.totalorder %s123, %s125
      %p132 = scmp.eq.s32.totalorder %s19, 3
      %p133 = por %p131, %p132
      %p134 = scmp.ne.s32.totalorder %s125, %s126
      %p135 = scmp.eq.s32.totalorder %s19, 0
      %p136 = por %p134, %p135
      %p137 = scmp.ne.s32.totalorder %s125, %s126
      %p138 = scmp.eq.s32.totalorder %s20, 3
      %p139 = por %p137, %p138
      %p141 = scmp.ne.s32.totalorder %s126, %s140
      %p142 = scmp.eq.s32.totalorder %s20, 0
      %p143 = por %p141, %p142
      %s144 = smul.u32 %s21, %s22
      %s145 = smul.u32 %s33, %s29
      %s146 = ssub.s32 %s144, %s145
      %p147 = scmp.eq.s32.totalorder %s146, 0
      %s149 = sadd.s32 %s148, 1
      %s150 = scalar_select %p147, %s148, %s149
      %p153 = pneg %p147
      %p154 = scmp.eq.s32.totalorder %s14, 3
      %p155 = por %p153, %p154
      %p156 = scmp.ne.s32.totalorder %s148, %s151
      %p157 = scmp.eq.s32.totalorder %s14, 0
      %p158 = por %p156, %p157
      %p159 = scmp.ne.s32.totalorder %s148, %s151
      %p160 = scmp.eq.s32.totalorder %s19, 3
      %p161 = por %p159, %p160
      %p162 = scmp.ne.s32.totalorder %s151, %s152
      %p163 = scmp.eq.s32.totalorder %s19, 0
      %p164 = por %p162, %p163
      %p165 = scmp.ne.s32.totalorder %s151, %s152
      %p166 = scmp.eq.s32.totalorder %s20, 3
      %p167 = por %p165, %p166
      %p169 = scmp.ne.s32.totalorder %s152, %s168
      %p170 = scmp.eq.s32.totalorder %s20, 0
      %p171 = por %p169, %p170
      %p172 = scmp.le.s32.totalorder 1, %s14
      %p173 = scmp.lt.s32.totalorder %s14, 5
      %p174 = pnand %p172, %p173
      %p175 = pneg %p174
      // Predicated region
      $region9: #{tpu_custom_call.1} parent=5 // pred_check
        _
      $region10: #{tpu_custom_call.1} parent=5 // pred_check_branch
        %177 = sbr.rel (%p174) target = $region12
      $region11: #{tpu_custom_call.1} parent=5 // pred_region
        %s178 = ssub.s32 %s14, 1
        // Predicated region
        $region13: #{tpu_custom_call.1} parent=11 // pred_check
          %p179 = pneg %p73
        $region14: #{tpu_custom_call.1} parent=11 // pred_check_branch
          %181 = sbr.rel (%p179) target = $region16
        $region15: #{tpu_custom_call.1} parent=11 // pred_region
          _
        $region16: #{tpu_custom_call.1} parent=11 // pred_fallthru
          _
        // Predicated region
        $region17: #{tpu_custom_call.1} parent=11 // pred_check
          %p182 = pneg %p94
        $region18: #{tpu_custom_call.1} parent=11 // pred_check_branch
          %184 = sbr.rel (%p182) target = $region20
        $region19: #{tpu_custom_call.1} parent=11 // pred_region
          _
        $region20: #{tpu_custom_call.1} parent=11 // pred_fallthru
          _
        // Predicated region
        $region21: #{tpu_custom_call.1} parent=11 // pred_check
          %p185 = pneg %p115
        $region22: #{tpu_custom_call.1} parent=11 // pred_check_branch
          %187 = sbr.rel (%p185) target = $region24
        $region23: #{tpu_custom_call.1} parent=11 // pred_region
          _
        $region24: #{tpu_custom_call.1} parent=11 // pred_fallthru
          _
        // Predicated region
        $region25: #{tpu_custom_call.1} parent=11 // pred_check
          %p188 = pneg %p136
        $region26: #{tpu_custom_call.1} parent=11 // pred_check_branch
          %190 = sbr.rel (%p188) target = $region28
        $region27: #{tpu_custom_call.1} parent=11 // pred_region
          _
        $region28: #{tpu_custom_call.1} parent=11 // pred_fallthru
          _
      $region12: #{tpu_custom_call.1} parent=5 // pred_fallthru
        _
      %p191 = scmp.lt.s32.totalorder %s14, 4
      // Predicated region
      $region29: #{tpu_custom_call.1} parent=5 // pred_check
        %p192 = pneg %p191
      $region30: #{tpu_custom_call.1} parent=5 // pred_check_branch
        %194 = sbr.rel (%p192) target = $region32
      $region31: #{tpu_custom_call.1} parent=5 // pred_region
        // Predicated region
        $region33: #{tpu_custom_call.1} parent=31 // pred_check
          %p195 = pneg %p46
        $region34: #{tpu_custom_call.1} parent=31 // pred_check_branch
          %197 = sbr.rel (%p195) target = $region36
        $region35: #{tpu_custom_call.1} parent=31 // pred_region
          %p198 = scmp.lt.s32.totalorder %s22, 1
          %s199 = scalar_select %p198, %s22, 1
          %s200 = smul.addr %s199, 3
          %s201 = smul.addr %s200, 2
          %s202 = scalar_lea.vmem %s0, %s201
        $region36: #{tpu_custom_call.1} parent=31 // pred_fallthru
          _
      $region32: #{tpu_custom_call.1} parent=5 // pred_fallthru
        _
      %p203 = scmp.le.s32.totalorder 1, %s14
      %p204 = scmp.lt.s32.totalorder %s14, 5
      %p205 = pnand %p203, %p204
      %p206 = pneg %p205
      // Predicated region
      $region37: #{tpu_custom_call.1} parent=5 // pred_check
        _
      $region38: #{tpu_custom_call.1} parent=5 // pred_check_branch
        %208 = sbr.rel (%p205) target = $region40
      $region39: #{tpu_custom_call.1} parent=5 // pred_region
        %s209 = ssub.s32 %s14, 1
        %p210 = scmp.lt.s32.totalorder %s24, 1
        %s211 = scalar_select %p210, %s24, 1
        %s212 = smul.addr %s211, 3
        %s213 = smul.addr %s212, 2
        %s214 = scalar_lea.vmem %s0, %s213
        %p215 = pneg %p52
        %p216 = pneg %p49
        %p217 = pneg %p73
        %p218 = pneg %p70
        %p219 = pneg %p94
        %p220 = pneg %p91
        %p221 = pneg %p115
        %p222 = pneg %p112
        %p223 = pneg %p136
        %p224 = pneg %p133
        %p225 = pneg %p164
        %p226 = pneg %p161
        %s227 = sand.u32 %s151, 1
        %s228 = scalar_lea.sflag [#allocation5], %s227
        %s229 = sand.u32 %s151, 1
        %s230 = smul.addr %s229, 24
        %s231 = scalar_lea.vmem [#allocation4], %s230
        %p232 = scmp.lt.s32.totalorder %s24, 1
        %s233 = scalar_select %p232, %s24, 1
        %s234 = smul.addr %s233, 3
        %s235 = smul.addr %s234, 2
        %s236 = scalar_lea.vmem %s0, %s235
        %s237 = smul.u32 %s23, %s24
        %v239 = vld [vmem:[%s236] sm:$0x3f]
        %v240 = vld [vmem:[%s1] sm:$0xf]
        %s241 = scalar_lea.vmem %s1, 4
        %v242 = vld [vmem:[%s241] sm:$0xf]
        %v244 = vcombine.high %v239, %v239
        %v246 = vunpack.c.l.s4 1983009808
        %v247 = vunpack.c.0.s8 %v246
        %v248 = vlaneseq
        %v249 = vshrl.u32 %v248, 7
        %v250 = vsub.s32 %v247, %v249
        %v251 = vrot.slane %v239, %v250
        %v253 = vunpack.c.l.s4 1983009808
        %v254 = vunpack.c.0.s8 %v253
        %v255 = vlaneseq
        %v256 = vshrl.u32 %v255, 7
        %v257 = vsub.s32 %v254, %v256
        %v258 = vrot.slane %v244, %v257
        %v259 = vcombine.high %v251, %v251
        %260 = vrot.lane.b32.xlu0 %v251, 127
        %v261 = vpop.permute.xlu0 %260
        %262 = vrot.lane.b32.xlu0 %v259, 127
        %v263 = vpop.permute.xlu0 %262
        %264 = vrot.lane.b32.xlu0 %v258, 127
        %v265 = vpop.permute.xlu0 %264
        %vm266 = vcmask 1039360
        %v267 = vsel %vm266, %v261, %v263
        %v268 = vsel %vm266, %v263, %v265
        %vm269 = vcmask 31744
        %v271 = vsel %vm269, %v242, 0
        %vm273 = vcmask 1041408
        %v275 = vsel %vm273, %v267, 0
        %v278 = vsel %vm273, %v268, 0
        %v281 = vsel %vm273, %v265, 0
        %283 = vmatprep.subr.bf16.mxu0 %v278
        %284 = vmatpush1.bf16.msra.mxu0 %v275
        %285 = vmatprep.subr.bf16.mxu0 0
        %286 = vmatpush1.bf16.msra.mxu0 0
        %287 = vmatprep.subr.bf16.mxu0 0
        %288 = vmatpush1.bf16.msra.mxu0 0
        %289 = vmatprep.subr.bf16.mxu0 0
        %290 = vmatpush1.bf16.msra.mxu0 0
        %291 = vmatprep.subr.bf16.mxu0 0
        %292 = vmatpush1.bf16.msra.mxu0 0
        %293 = vmatprep.subr.bf16.mxu0 0
        %294 = vmatpush1.bf16.msra.mxu0 0
        %295 = vmatprep.subr.bf16.mxu0 0
        %296 = vmatpush1.bf16.msra.mxu0 0
        %297 = vmatprep.subr.bf16.mxu0 0
        %298 = vmatpush1.bf16.msra.mxu0 0
        %299 = vmatprep.subr.bf16.mxu0 0
        %300 = vmatpush1.bf16.msra.mxu0 0
        %301 = vmatprep.subr.bf16.mxu0 0
        %302 = vmatpush1.bf16.msra.mxu0 0
        %303 = vmatprep.subr.bf16.mxu0 0
        %304 = vmatpush1.bf16.msra.mxu0 0
        %305 = vmatprep.subr.bf16.mxu0 0
        %306 = vmatpush1.bf16.msra.mxu0 0
        %307 = vmatprep.subr.bf16.mxu0 0
        %308 = vmatpush1.bf16.msra.mxu0 0
        %309 = vmatprep.subr.bf16.mxu0 0
        %310 = vmatpush1.bf16.msra.mxu0 0
        %311 = vmatprep.subr.bf16.mxu0 0
        %312 = vmatpush1.bf16.msra.mxu0 0
        %313 = vmatprep.subr.bf16.mxu0 0
        %314 = vmatpush1.bf16.msra.mxu0 0
        %315 = vmatprep.mubr.bf16.mxu0 0
        %316 = vmatmul.mubr.bf16.gmra.mrb[0].mxu0 %v271
        %v317 = vpop.f32.mrb[0].mxu0
        %v318 = vadd.f32 0.0, %v317
        %v319 = vpop.f32.mrb[0].mxu0
        %v320 = vadd.f32 0.0, %v319
        %v321 = vpop.f32.mrb[0].mxu0
        %v322 = vpop.f32.mrb[0].mxu0
        %323 = vdwg.mxu0
        %324 = vmatprep.subr.bf16.mxu0 0
        %325 = vmatpush1.bf16.msra.mxu0 %v281
        %326 = vmatprep.subr.bf16.mxu0 0
        %327 = vmatpush1.bf16.msra.mxu0 0
        %328 = vmatprep.subr.bf16.mxu0 0
        %329 = vmatpush1.bf16.msra.mxu0 0
        %330 = vmatprep.subr.bf16.mxu0 0
        %331 = vmatpush1.bf16.msra.mxu0 0
        %332 = vmatprep.subr.bf16.mxu0 0
        %333 = vmatpush1.bf16.msra.mxu0 0
        %334 = vmatprep.subr.bf16.mxu0 0
        %335 = vmatpush1.bf16.msra.mxu0 0
        %336 = vmatprep.subr.bf16.mxu0 0
        %337 = vmatpush1.bf16.msra.mxu0 0
        %338 = vmatprep.subr.bf16.mxu0 0
        %339 = vmatpush1.bf16.msra.mxu0 0
        %340 = vmatprep.subr.bf16.mxu0 0
        %341 = vmatpush1.bf16.msra.mxu0 0
        %342 = vmatprep.subr.bf16.mxu0 0
        %343 = vmatpush1.bf16.msra.mxu0 0
        %344 = vmatprep.subr.bf16.mxu0 0
        %345 = vmatpush1.bf16.msra.mxu0 0
        %346 = vmatprep.subr.bf16.mxu0 0
        %347 = vmatpush1.bf16.msra.mxu0 0
        %348 = vmatprep.subr.bf16.mxu0 0
        %349 = vmatpush1.bf16.msra.mxu0 0
        %350 = vmatprep.subr.bf16.mxu0 0
        %351 = vmatpush1.bf16.msra.mxu0 0
        %352 = vmatprep.subr.bf16.mxu0 0
        %353 = vmatpush1.bf16.msra.mxu0 0
        %354 = vmatprep.subr.bf16.mxu0 0
        %355 = vmatpush1.bf16.msra.mxu0 0
        %356 = vmatprep.mubr.bf16.mxu0 0
        %357 = vmatmul.mubr.bf16.gmra.mrb[0].mxu0 %v271
        %v358 = vpop.f32.mrb[0].mxu0
        %v359 = vadd.f32 0.0, %v358
        %v360 = vpop.f32.mrb[0].mxu0
        %v361 = vpop.f32.mrb[0].mxu0
        %v362 = vpop.f32.mrb[0].mxu0
        %363 = vdwg.mxu0
        %v365 = vsel %vm269, %v240, 0
        %v368 = vsel %vm273, %v251, 0
        %v371 = vsel %vm273, %v259, 0
        %v374 = vsel %vm273, %v258, 0
        %376 = vmatprep.subr.bf16.mxu0 %v371
        %377 = vmatpush1.bf16.msra.mxu0 %v368
        %378 = vmatprep.subr.bf16.mxu0 0
        %379 = vmatpush1.bf16.msra.mxu0 0
        %380 = vmatprep.subr.bf16.mxu0 0
        %381 = vmatpush1.bf16.msra.mxu0 0
        %382 = vmatprep.subr.bf16.mxu0 0
        %383 = vmatpush1.bf16.msra.mxu0 0
        %384 = vmatprep.subr.bf16.mxu0 0
        %385 = vmatpush1.bf16.msra.mxu0 0
        %386 = vmatprep.subr.bf16.mxu0 0
        %387 = vmatpush1.bf16.msra.mxu0 0
        %388 = vmatprep.subr.bf16.mxu0 0
        %389 = vmatpush1.bf16.msra.mxu0 0
        %390 = vmatprep.subr.bf16.mxu0 0
        %391 = vmatpush1.bf16.msra.mxu0 0
        %392 = vmatprep.subr.bf16.mxu0 0
        %393 = vmatpush1.bf16.msra.mxu0 0
        %394 = vmatprep.subr.bf16.mxu0 0
        %395 = vmatpush1.bf16.msra.mxu0 0
        %396 = vmatprep.subr.bf16.mxu0 0
        %397 = vmatpush1.bf16.msra.mxu0 0
        %398 = vmatprep.subr.bf16.mxu0 0
        %399 = vmatpush1.bf16.msra.mxu0 0
        %400 = vmatprep.subr.bf16.mxu0 0
        %401 = vmatpush1.bf16.msra.mxu0 0
        %402 = vmatprep.subr.bf16.mxu0 0
        %403 = vmatpush1.bf16.msra.mxu0 0
        %404 = vmatprep.subr.bf16.mxu0 0
        %405 = vmatpush1.bf16.msra.mxu0 0
        %406 = vmatprep.subr.bf16.mxu0 0
        %407 = vmatpush1.bf16.msra.mxu0 0
        %408 = vmatprep.mubr.bf16.mxu0 0
        %409 = vmatmul.mubr.bf16.gmra.mrb[0].mxu0 %v365
        %v410 = vpop.f32.mrb[0].mxu0
        %v411 = vadd.f32 %v318, %v410
        %v412 = vpop.f32.mrb[0].mxu0
        %v413 = vadd.f32 %v320, %v412
        %v414 = vpop.f32.mrb[0].mxu0
        %v415 = vpop.f32.mrb[0].mxu0
        %416 = vdwg.mxu0
        %417 = vmatprep.subr.bf16.mxu0 0
        %418 = vmatpush1.bf16.msra.mxu0 %v374
        %419 = vmatprep.subr.bf16.mxu0 0
        %420 = vmatpush1.bf16.msra.mxu0 0
        %421 = vmatprep.subr.bf16.mxu0 0
        %422 = vmatpush1.bf16.msra.mxu0 0
        %423 = vmatprep.subr.bf16.mxu0 0
        %424 = vmatpush1.bf16.msra.mxu0 0
        %425 = vmatprep.subr.bf16.mxu0 0
        %426 = vmatpush1.bf16.msra.mxu0 0
        %427 = vmatprep.subr.bf16.mxu0 0
        %428 = vmatpush1.bf16.msra.mxu0 0
        %429 = vmatprep.subr.bf16.mxu0 0
        %430 = vmatpush1.bf16.msra.mxu0 0
        %431 = vmatprep.subr.bf16.mxu0 0
        %432 = vmatpush1.bf16.msra.mxu0 0
        %433 = vmatprep.subr.bf16.mxu0 0
        %434 = vmatpush1.bf16.msra.mxu0 0
        %435 = vmatprep.subr.bf16.mxu0 0
        %436 = vmatpush1.bf16.msra.mxu0 0
        %437 = vmatprep.subr.bf16.mxu0 0
        %438 = vmatpush1.bf16.msra.mxu0 0
        %439 = vmatprep.subr.bf16.mxu0 0
        %440 = vmatpush1.bf16.msra.mxu0 0
        %441 = vmatprep.subr.bf16.mxu0 0
        %442 = vmatpush1.bf16.msra.mxu0 0
        %443 = vmatprep.subr.bf16.mxu0 0
        %444 = vmatpush1.bf16.msra.mxu0 0
        %445 = vmatprep.subr.bf16.mxu0 0
        %446 = vmatpush1.bf16.msra.mxu0 0
        %447 = vmatprep.subr.bf16.mxu0 0
        %448 = vmatpush1.bf16.msra.mxu0 0
        %449 = vmatprep.mubr.bf16.mxu0 0
        %450 = vmatmul.mubr.bf16.gmra.mrb[0].mxu0 %v365
        %v451 = vpop.f32.mrb[0].mxu0
        %v452 = vadd.f32 %v359, %v451
        %v453 = vpop.f32.mrb[0].mxu0
        %v454 = vpop.f32.mrb[0].mxu0
        %v455 = vpop.f32.mrb[0].mxu0
        %456 = vdwg.mxu0
        %s457 = scalar_lea.vmem %s1, 8
        %v458 = vld [vmem:[%s457] sm:$0xf]
        %459 = vrot.lane.b32.xlu0 %v251, 126
        %v460 = vpop.permute.xlu0 %459
        %461 = vrot.lane.b32.xlu0 %v259, 126
        %v462 = vpop.permute.xlu0 %461
        %463 = vrot.lane.b32.xlu0 %v258, 126
        %v464 = vpop.permute.xlu0 %463
        %vm465 = vcmask 1031168
        %v466 = vsel %vm465, %v460, %v462
        %v467 = vsel %vm465, %v462, %v464
        %v469 = vsel %vm269, %v458, 0
        %v472 = vsel %vm273, %v466, 0
        %v475 = vsel %vm273, %v467, 0
        %v478 = vsel %vm273, %v464, 0
        %480 = vmatprep.subr.bf16.mxu0 %v475
        %481 = vmatpush1.bf16.msra.mxu0 %v472
        %482 = vmatprep.subr.bf16.mxu0 0
        %483 = vmatpush1.bf16.msra.mxu0 0
        %484 = vmatprep.subr.bf16.mxu0 0
        %485 = vmatpush1.bf16.msra.mxu0 0
        %486 = vmatprep.subr.bf16.mxu0 0
        %487 = vmatpush1.bf16.msra.mxu0 0
        %488 = vmatprep.subr.bf16.mxu0 0
        %489 = vmatpush1.bf16.msra.mxu0 0
        %490 = vmatprep.subr.bf16.mxu0 0
        %491 = vmatpush1.bf16.msra.mxu0 0
        %492 = vmatprep.subr.bf16.mxu0 0
        %493 = vmatpush1.bf16.msra.mxu0 0
        %494 = vmatprep.subr.bf16.mxu0 0
        %495 = vmatpush1.bf16.msra.mxu0 0
        %496 = vmatprep.subr.bf16.mxu0 0
        %497 = vmatpush1.bf16.msra.mxu0 0
        %498 = vmatprep.subr.bf16.mxu0 0
        %499 = vmatpush1.bf16.msra.mxu0 0
        %500 = vmatprep.subr.bf16.mxu0 0
        %501 = vmatpush1.bf16.msra.mxu0 0
        %502 = vmatprep.subr.bf16.mxu0 0
        %503 = vmatpush1.bf16.msra.mxu0 0
        %504 = vmatprep.subr.bf16.mxu0 0
        %505 = vmatpush1.bf16.msra.mxu0 0
        %506 = vmatprep.subr.bf16.mxu0 0
        %507 = vmatpush1.bf16.msra.mxu0 0
        %508 = vmatprep.subr.bf16.mxu0 0
        %509 = vmatpush1.bf16.msra.mxu0 0
        %510 = vmatprep.subr.bf16.mxu0 0
        %511 = vmatpush1.bf16.msra.mxu0 0
        %512 = vmatprep.mubr.bf16.mxu0 0
        %513 = vmatmul.mubr.bf16.gmra.mrb[0].mxu0 %v469
        %v514 = vpop.f32.mrb[0].mxu0
        %v515 = vadd.f32 0.0, %v514
        %v516 = vpop.f32.mrb[0].mxu0
        %v517 = vadd.f32 0.0, %v516
        %v518 = vpop.f32.mrb[0].mxu0
        %v519 = vpop.f32.mrb[0].mxu0
        %520 = vdwg.mxu0
        %521 = vmatprep.subr.bf16.mxu0 0
        %522 = vmatpush1.bf16.msra.mxu0 %v478
        %523 = vmatprep.subr.bf16.mxu0 0
        %524 = vmatpush1.bf16.msra.mxu0 0
        %525 = vmatprep.subr.bf16.mxu0 0
        %526 = vmatpush1.bf16.msra.mxu0 0
        %527 = vmatprep.subr.bf16.mxu0 0
        %528 = vmatpush1.bf16.msra.mxu0 0
        %529 = vmatprep.subr.bf16.mxu0 0
        %530 = vmatpush1.bf16.msra.mxu0 0
        %531 = vmatprep.subr.bf16.mxu0 0
        %532 = vmatpush1.bf16.msra.mxu0 0
        %533 = vmatprep.subr.bf16.mxu0 0
        %534 = vmatpush1.bf16.msra.mxu0 0
        %535 = vmatprep.subr.bf16.mxu0 0
        %536 = vmatpush1.bf16.msra.mxu0 0
        %537 = vmatprep.subr.bf16.mxu0 0
        %538 = vmatpush1.bf16.msra.mxu0 0
        %539 = vmatprep.subr.bf16.mxu0 0
        %540 = vmatpush1.bf16.msra.mxu0 0
        %541 = vmatprep.subr.bf16.mxu0 0
        %542 = vmatpush1.bf16.msra.mxu0 0
        %543 = vmatprep.subr.bf16.mxu0 0
        %544 = vmatpush1.bf16.msra.mxu0 0
        %545 = vmatprep.subr.bf16.mxu0 0
        %546 = vmatpush1.bf16.msra.mxu0 0
        %547 = vmatprep.subr.bf16.mxu0 0
        %548 = vmatpush1.bf16.msra.mxu0 0
        %549 = vmatprep.subr.bf16.mxu0 0
        %550 = vmatpush1.bf16.msra.mxu0 0
        %551 = vmatprep.subr.bf16.mxu0 0
        %552 = vmatpush1.bf16.msra.mxu0 0
        %553 = vmatprep.mubr.bf16.mxu0 0
        %554 = vmatmul.mubr.bf16.gmra.mrb[0].mxu0 %v469
        %v555 = vpop.f32.mrb[0].mxu0
        %v556 = vadd.f32 0.0, %v555
        %v557 = vpop.f32.mrb[0].mxu0
        %v558 = vpop.f32.mrb[0].mxu0
        %v559 = vpop.f32.mrb[0].mxu0
        %560 = vdwg.mxu0
        %v561 = vadd.f32 %v411, %v515
        %v562 = vadd.f32 %v413, %v517
        %v563 = vadd.f32 %v452, %v556
        %s564 = scalar_lea.vmem %s1, 12
        %v565 = vld [vmem:[%s564] sm:$0xf]
        %566 = vrot.lane.b32.xlu0 %v251, 110
        %v567 = vpop.permute.xlu0 %566
        %568 = vrot.lane.b32.xlu0 %v259, 110
        %v569 = vpop.permute.xlu0 %568
        %570 = vrot.lane.b32.xlu0 %v258, 110
        %v571 = vpop.permute.xlu0 %570
        %vm572 = vcmask 900096
        %v573 = vsel %vm572, %v567, %v569
        %v574 = vsel %vm572, %v569, %v571
        %v576 = vsel %vm269, %v565, 0
        %v579 = vsel %vm273, %v573, 0
        %v582 = vsel %vm273, %v574, 0
        %v585 = vsel %vm273, %v571, 0
        %587 = vmatprep.subr.bf16.mxu0 %v582
        %588 = vmatpush1.bf16.msra.mxu0 %v579
        %589 = vmatprep.subr.bf16.mxu0 0
        %590 = vmatpush1.bf16.msra.mxu0 0
        %591 = vmatprep.subr.bf16.mxu0 0
        %592 = vmatpush1.bf16.msra.mxu0 0
        %593 = vmatprep.subr.bf16.mxu0 0
        %594 = vmatpush1.bf16.msra.mxu0 0
        %595 = vmatprep.subr.bf16.mxu0 0
        %596 = vmatpush1.bf16.msra.mxu0 0
        %597 = vmatprep.subr.bf16.mxu0 0
        %598 = vmatpush1.bf16.msra.mxu0 0
        %599 = vmatprep.subr.bf16.mxu0 0
        %600 = vmatpush1.bf16.msra.mxu0 0
        %601 = vmatprep.subr.bf16.mxu0 0
        %602 = vmatpush1.bf16.msra.mxu0 0
        %603 = vmatprep.subr.bf16.mxu0 0
        %604 = vmatpush1.bf16.msra.mxu0 0
        %605 = vmatprep.subr.bf16.mxu0 0
        %606 = vmatpush1.bf16.msra.mxu0 0
        %607 = vmatprep.subr.bf16.mxu0 0
        %608 = vmatpush1.bf16.msra.mxu0 0
        %609 = vmatprep.subr.bf16.mxu0 0
        %610 = vmatpush1.bf16.msra.mxu0 0
        %611 = vmatprep.subr.bf16.mxu0 0
        %612 = vmatpush1.bf16.msra.mxu0 0
        %613 = vmatprep.subr.bf16.mxu0 0
        %614 = vmatpush1.bf16.msra.mxu0 0
        %615 = vmatprep.subr.bf16.mxu0 0
        %616 = vmatpush1.bf16.msra.mxu0 0
        %617 = vmatprep.subr.bf16.mxu0 0
        %618 = vmatpush1.bf16.msra.mxu0 0
        %619 = vmatprep.mubr.bf16.mxu0 0
        %620 = vmatmul.mubr.bf16.gmra.mrb[0].mxu0 %v576
        %v621 = vpop.f32.mrb[0].mxu0
        %v622 = vadd.f32 0.0, %v621
        %v623 = vpop.f32.mrb[0].mxu0
        %v624 = vadd.f32 0.0, %v623
        %v625 = vpop.f32.mrb[0].mxu0
        %v626 = vpop.f32.mrb[0].mxu0
        %627 = vdwg.mxu0
        %628 = vmatprep.subr.bf16.mxu0 0
        %629 = vmatpush1.bf16.msra.mxu0 %v585
        %630 = vmatprep.subr.bf16.mxu0 0
        %631 = vmatpush1.bf16.msra.mxu0 0
        %632 = vmatprep.subr.bf16.mxu0 0
        %633 = vmatpush1.bf16.msra.mxu0 0
        %634 = vmatprep.subr.bf16.mxu0 0
        %635 = vmatpush1.bf16.msra.mxu0 0
        %636 = vmatprep.subr.bf16.mxu0 0
        %637 = vmatpush1.bf16.msra.mxu0 0
        %638 = vmatprep.subr.bf16.mxu0 0
        %639 = vmatpush1.bf16.msra.mxu0 0
        %640 = vmatprep.subr.bf16.mxu0 0
        %641 = vmatpush1.bf16.msra.mxu0 0
        %642 = vmatprep.subr.bf16.mxu0 0
        %643 = vmatpush1.bf16.msra.mxu0 0
        %644 = vmatprep.subr.bf16.mxu0 0
        %645 = vmatpush1.bf16.msra.mxu0 0
        %646 = vmatprep.subr.bf16.mxu0 0
        %647 = vmatpush1.bf16.msra.mxu0 0
        %648 = vmatprep.subr.bf16.mxu0 0
        %649 = vmatpush1.bf16.msra.mxu0 0
        %650 = vmatprep.subr.bf16.mxu0 0
        %651 = vmatpush1.bf16.msra.mxu0 0
        %652 = vmatprep.subr.bf16.mxu0 0
        %653 = vmatpush1.bf16.msra.mxu0 0
        %654 = vmatprep.subr.bf16.mxu0 0
        %655 = vmatpush1.bf16.msra.mxu0 0
        %656 = vmatprep.subr.bf16.mxu0 0
        %657 = vmatpush1.bf16.msra.mxu0 0
        %658 = vmatprep.subr.bf16.mxu0 0
        %659 = vmatpush1.bf16.msra.mxu0 0
        %660 = vmatprep.mubr.bf16.mxu0 0
        %661 = vmatmul.mubr.bf16.gmra.mrb[0].mxu0 %v576
        %v662 = vpop.f32.mrb[0].mxu0
        %v663 = vadd.f32 0.0, %v662
        %v664 = vpop.f32.mrb[0].mxu0
        %v665 = vpop.f32.mrb[0].mxu0
        %v666 = vpop.f32.mrb[0].mxu0
        %667 = vdwg.mxu0
        %v668 = vadd.f32 %v561, %v622
        %v669 = vadd.f32 %v562, %v624
        %v670 = vadd.f32 %v563, %v663
        %s671 = scalar_lea.vmem %s1, 16
        %v672 = vld [vmem:[%s671] sm:$0xf]
        %673 = vrot.lane.b32.xlu0 %v251, 109
        %v674 = vpop.permute.xlu0 %673
        %675 = vrot.lane.b32.xlu0 %v259, 109
        %v676 = vpop.permute.xlu0 %675
        %677 = vrot.lane.b32.xlu0 %v258, 109
        %v678 = vpop.permute.xlu0 %677
        %vm679 = vcmask 891904
        %v680 = vsel %vm679, %v674, %v676
        %v681 = vsel %vm679, %v676, %v678
        %v683 = vsel %vm269, %v672, 0
        %v686 = vsel %vm273, %v680, 0
        %v689 = vsel %vm273, %v681, 0
        %v692 = vsel %vm273, %v678, 0
        %694 = vmatprep.subr.bf16.mxu0 %v689
        %695 = vmatpush1.bf16.msra.mxu0 %v686
        %696 = vmatprep.subr.bf16.mxu0 0
        %697 = vmatpush1.bf16.msra.mxu0 0
        %698 = vmatprep.subr.bf16.mxu0 0
        %699 = vmatpush1.bf16.msra.mxu0 0
        %700 = vmatprep.subr.bf16.mxu0 0
        %701 = vmatpush1.bf16.msra.mxu0 0
        %702 = vmatprep.subr.bf16.mxu0 0
        %703 = vmatpush1.bf16.msra.mxu0 0
        %704 = vmatprep.subr.bf16.mxu0 0
        %705 = vmatpush1.bf16.msra.mxu0 0
        %706 = vmatprep.subr.bf16.mxu0 0
        %707 = vmatpush1.bf16.msra.mxu0 0
        %708 = vmatprep.subr.bf16.mxu0 0
        %709 = vmatpush1.bf16.msra.mxu0 0
        %710 = vmatprep.subr.bf16.mxu0 0
        %711 = vmatpush1.bf16.msra.mxu0 0
        %712 = vmatprep.subr.bf16.mxu0 0
        %713 = vmatpush1.bf16.msra.mxu0 0
        %714 = vmatprep.subr.bf16.mxu0 0
        %715 = vmatpush1.bf16.msra.mxu0 0
        %716 = vmatprep.subr.bf16.mxu0 0
        %717 = vmatpush1.bf16.msra.mxu0 0
        %718 = vmatprep.subr.bf16.mxu0 0
        %719 = vmatpush1.bf16.msra.mxu0 0
        %720 = vmatprep.subr.bf16.mxu0 0
        %721 = vmatpush1.bf16.msra.mxu0 0
        %722 = vmatprep.subr.bf16.mxu0 0
        %723 = vmatpush1.bf16.msra.mxu0 0
        %724 = vmatprep.subr.bf16.mxu0 0
        %725 = vmatpush1.bf16.msra.mxu0 0
        %726 = vmatprep.mubr.bf16.mxu0 0
        %727 = vmatmul.mubr.bf16.gmra.mrb[0].mxu0 %v683
        %v728 = vpop.f32.mrb[0].mxu0
        %v729 = vadd.f32 0.0, %v728
        %v730 = vpop.f32.mrb[0].mxu0
        %v731 = vadd.f32 0.0, %v730
        %v732 = vpop.f32.mrb[0].mxu0
        %v733 = vpop.f32.mrb[0].mxu0
        %734 = vdwg.mxu0
        %735 = vmatprep.subr.bf16.mxu0 0
        %736 = vmatpush1.bf16.msra.mxu0 %v692
        %737 = vmatprep.subr.bf16.mxu0 0
        %738 = vmatpush1.bf16.msra.mxu0 0
        %739 = vmatprep.subr.bf16.mxu0 0
        %740 = vmatpush1.bf16.msra.mxu0 0
        %741 = vmatprep.subr.bf16.mxu0 0
        %742 = vmatpush1.bf16.msra.mxu0 0
        %743 = vmatprep.subr.bf16.mxu0 0
        %744 = vmatpush1.bf16.msra.mxu0 0
        %745 = vmatprep.subr.bf16.mxu0 0
        %746 = vmatpush1.bf16.msra.mxu0 0
        %747 = vmatprep.subr.bf16.mxu0 0
        %748 = vmatpush1.bf16.msra.mxu0 0
        %749 = vmatprep.subr.bf16.mxu0 0
        %750 = vmatpush1.bf16.msra.mxu0 0
        %751 = vmatprep.subr.bf16.mxu0 0
        %752 = vmatpush1.bf16.msra.mxu0 0
        %753 = vmatprep.subr.bf16.mxu0 0
        %754 = vmatpush1.bf16.msra.mxu0 0
        %755 = vmatprep.subr.bf16.mxu0 0
        %756 = vmatpush1.bf16.msra.mxu0 0
        %757 = vmatprep.subr.bf16.mxu0 0
        %758 = vmatpush1.bf16.msra.mxu0 0
        %759 = vmatprep.subr.bf16.mxu0 0
        %760 = vmatpush1.bf16.msra.mxu0 0
        %761 = vmatprep.subr.bf16.mxu0 0
        %762 = vmatpush1.bf16.msra.mxu0 0
        %763 = vmatprep.subr.bf16.mxu0 0
        %764 = vmatpush1.bf16.msra.mxu0 0
        %765 = vmatprep.subr.bf16.mxu0 0
        %766 = vmatpush1.bf16.msra.mxu0 0
        %767 = vmatprep.mubr.bf16.mxu0 0
        %768 = vmatmul.mubr.bf16.gmra.mrb[0].mxu0 %v683
        %v769 = vpop.f32.mrb[0].mxu0
        %v770 = vadd.f32 0.0, %v769
        %v771 = vpop.f32.mrb[0].mxu0
        %v772 = vpop.f32.mrb[0].mxu0
        %v773 = vpop.f32.mrb[0].mxu0
        %774 = vdwg.mxu0
        %v775 = vadd.f32 %v668, %v729
        %v776 = vadd.f32 %v669, %v731
        %v777 = vadd.f32 %v670, %v770
        %s778 = scalar_lea.vmem %s1, 20
        %v779 = vld [vmem:[%s778] sm:$0xf]
        %780 = vrot.lane.b32.xlu0 %v251, 108
        %v781 = vpop.permute.xlu0 %780
        %782 = vrot.lane.b32.xlu0 %v259, 108
        %v783 = vpop.permute.xlu0 %782
        %784 = vrot.lane.b32.xlu0 %v258, 108
        %v785 = vpop.permute.xlu0 %784
        %vm786 = vcmask 883712
        %v787 = vsel %vm786, %v781, %v783
        %v788 = vsel %vm786, %v783, %v785
        %v790 = vsel %vm269, %v779, 0
        %v793 = vsel %vm273, %v787, 0
        %v796 = vsel %vm273, %v788, 0
        %v799 = vsel %vm273, %v785, 0
        %801 = vmatprep.subr.bf16.mxu0 %v796
        %802 = vmatpush1.bf16.msra.mxu0 %v793
        %803 = vmatprep.subr.bf16.mxu0 0
        %804 = vmatpush1.bf16.msra.mxu0 0
        %805 = vmatprep.subr.bf16.mxu0 0
        %806 = vmatpush1.bf16.msra.mxu0 0
        %807 = vmatprep.subr.bf16.mxu0 0
        %808 = vmatpush1.bf16.msra.mxu0 0
        %809 = vmatprep.subr.bf16.mxu0 0
        %810 = vmatpush1.bf16.msra.mxu0 0
        %811 = vmatprep.subr.bf16.mxu0 0
        %812 = vmatpush1.bf16.msra.mxu0 0
        %813 = vmatprep.subr.bf16.mxu0 0
        %814 = vmatpush1.bf16.msra.mxu0 0
        %815 = vmatprep.subr.bf16.mxu0 0
        %816 = vmatpush1.bf16.msra.mxu0 0
        %817 = vmatprep.subr.bf16.mxu0 0
        %818 = vmatpush1.bf16.msra.mxu0 0
        %819 = vmatprep.subr.bf16.mxu0 0
        %820 = vmatpush1.bf16.msra.mxu0 0
        %821 = vmatprep.subr.bf16.mxu0 0
        %822 = vmatpush1.bf16.msra.mxu0 0
        %823 = vmatprep.subr.bf16.mxu0 0
        %824 = vmatpush1.bf16.msra.mxu0 0
        %825 = vmatprep.subr.bf16.mxu0 0
        %826 = vmatpush1.bf16.msra.mxu0 0
        %827 = vmatprep.subr.bf16.mxu0 0
        %828 = vmatpush1.bf16.msra.mxu0 0
        %829 = vmatprep.subr.bf16.mxu0 0
        %830 = vmatpush1.bf16.msra.mxu0 0
        %831 = vmatprep.subr.bf16.mxu0 0
        %832 = vmatpush1.bf16.msra.mxu0 0
        %833 = vmatprep.mubr.bf16.mxu0 0
        %834 = vmatmul.mubr.bf16.gmra.mrb[0].mxu0 %v790
        %v835 = vpop.f32.mrb[0].mxu0
        %v836 = vadd.f32 0.0, %v835
        %v837 = vpop.f32.mrb[0].mxu0
        %v838 = vadd.f32 0.0, %v837
        %v839 = vpop.f32.mrb[0].mxu0
        %v840 = vpop.f32.mrb[0].mxu0
        %841 = vdwg.mxu0
        %842 = vmatprep.subr.bf16.mxu0 0
        %843 = vmatpush1.bf16.msra.mxu0 %v799
        %844 = vmatprep.subr.bf16.mxu0 0
        %845 = vmatpush1.bf16.msra.mxu0 0
        %846 = vmatprep.subr.bf16.mxu0 0
        %847 = vmatpush1.bf16.msra.mxu0 0
        %848 = vmatprep.subr.bf16.mxu0 0
        %849 = vmatpush1.bf16.msra.mxu0 0
        %850 = vmatprep.subr.bf16.mxu0 0
        %851 = vmatpush1.bf16.msra.mxu0 0
        %852 = vmatprep.subr.bf16.mxu0 0
        %853 = vmatpush1.bf16.msra.mxu0 0
        %854 = vmatprep.subr.bf16.mxu0 0
        %855 = vmatpush1.bf16.msra.mxu0 0
        %856 = vmatprep.subr.bf16.mxu0 0
        %857 = vmatpush1.bf16.msra.mxu0 0
        %858 = vmatprep.subr.bf16.mxu0 0
        %859 = vmatpush1.bf16.msra.mxu0 0
        %860 = vmatprep.subr.bf16.mxu0 0
        %861 = vmatpush1.bf16.msra.mxu0 0
        %862 = vmatprep.subr.bf16.mxu0 0
        %863 = vmatpush1.bf16.msra.mxu0 0
        %864 = vmatprep.subr.bf16.mxu0 0
        %865 = vmatpush1.bf16.msra.mxu0 0
        %866 = vmatprep.subr.bf16.mxu0 0
        %867 = vmatpush1.bf16.msra.mxu0 0
        %868 = vmatprep.subr.bf16.mxu0 0
        %869 = vmatpush1.bf16.msra.mxu0 0
        %870 = vmatprep.subr.bf16.mxu0 0
        %871 = vmatpush1.bf16.msra.mxu0 0
        %872 = vmatprep.subr.bf16.mxu0 0
        %873 = vmatpush1.bf16.msra.mxu0 0
        %874 = vmatprep.mubr.bf16.mxu0 0
        %875 = vmatmul.mubr.bf16.gmra.mrb[0].mxu0 %v790
        %v876 = vpop.f32.mrb[0].mxu0
        %v877 = vadd.f32 0.0, %v876
        %v878 = vpop.f32.mrb[0].mxu0
        %v879 = vpop.f32.mrb[0].mxu0
        %v880 = vpop.f32.mrb[0].mxu0
        %881 = vdwg.mxu0
        %v882 = vadd.f32 %v775, %v836
        %v883 = vadd.f32 %v776, %v838
        %v884 = vadd.f32 %v777, %v877
        %s885 = scalar_lea.vmem %s1, 24
        %v886 = vld [vmem:[%s885] sm:$0xf]
        %887 = vrot.lane.b32.xlu0 %v251, 92
        %v888 = vpop.permute.xlu0 %887
        %889 = vrot.lane.b32.xlu0 %v259, 92
        %v890 = vpop.permute.xlu0 %889
        %891 = vrot.lane.b32.xlu0 %v258, 92
        %v892 = vpop.permute.xlu0 %891
        %vm893 = vcmask 752640
        %v894 = vsel %vm893, %v888, %v890
        %v895 = vsel %vm893, %v890, %v892
        %v897 = vsel %vm269, %v886, 0
        %v900 = vsel %vm273, %v894, 0
        %v903 = vsel %vm273, %v895, 0
        %v906 = vsel %vm273, %v892, 0
        %908 = vmatprep.subr.bf16.mxu0 %v903
        %909 = vmatpush1.bf16.msra.mxu0 %v900
        %910 = vmatprep.subr.bf16.mxu0 0
        %911 = vmatpush1.bf16.msra.mxu0 0
        %912 = vmatprep.subr.bf16.mxu0 0
        %913 = vmatpush1.bf16.msra.mxu0 0
        %914 = vmatprep.subr.bf16.mxu0 0
        %915 = vmatpush1.bf16.msra.mxu0 0
        %916 = vmatprep.subr.bf16.mxu0 0
        %917 = vmatpush1.bf16.msra.mxu0 0
        %918 = vmatprep.subr.bf16.mxu0 0
        %919 = vmatpush1.bf16.msra.mxu0 0
        %920 = vmatprep.subr.bf16.mxu0 0
        %921 = vmatpush1.bf16.msra.mxu0 0
        %922 = vmatprep.subr.bf16.mxu0 0
        %923 = vmatpush1.bf16.msra.mxu0 0
        %924 = vmatprep.subr.bf16.mxu0 0
        %925 = vmatpush1.bf16.msra.mxu0 0
        %926 = vmatprep.subr.bf16.mxu0 0
        %927 = vmatpush1.bf16.msra.mxu0 0
        %928 = vmatprep.subr.bf16.mxu0 0
        %929 = vmatpush1.bf16.msra.mxu0 0
        %930 = vmatprep.subr.bf16.mxu0 0
        %931 = vmatpush1.bf16.msra.mxu0 0
        %932 = vmatprep.subr.bf16.mxu0 0
        %933 = vmatpush1.bf16.msra.mxu0 0
        %934 = vmatprep.subr.bf16.mxu0 0
        %935 = vmatpush1.bf16.msra.mxu0 0
        %936 = vmatprep.subr.bf16.mxu0 0
        %937 = vmatpush1.bf16.msra.mxu0 0
        %938 = vmatprep.subr.bf16.mxu0 0
        %939 = vmatpush1.bf16.msra.mxu0 0
        %940 = vmatprep.mubr.bf16.mxu0 0
        %941 = vmatmul.mubr.bf16.gmra.mrb[0].mxu0 %v897
        %v942 = vpop.f32.mrb[0].mxu0
        %v943 = vadd.f32 0.0, %v942
        %v944 = vpop.f32.mrb[0].mxu0
        %v945 = vadd.f32 0.0, %v944
        %v946 = vpop.f32.mrb[0].mxu0
        %v947 = vpop.f32.mrb[0].mxu0
        %948 = vdwg.mxu0
        %949 = vmatprep.subr.bf16.mxu0 0
        %950 = vmatpush1.bf16.msra.mxu0 %v906
        %951 = vmatprep.subr.bf16.mxu0 0
        %952 = vmatpush1.bf16.msra.mxu0 0
        %953 = vmatprep.subr.bf16.mxu0 0
        %954 = vmatpush1.bf16.msra.mxu0 0
        %955 = vmatprep.subr.bf16.mxu0 0
        %956 = vmatpush1.bf16.msra.mxu0 0
        %957 = vmatprep.subr.bf16.mxu0 0
        %958 = vmatpush1.bf16.msra.mxu0 0
        %959 = vmatprep.subr.bf16.mxu0 0
        %960 = vmatpush1.bf16.msra.mxu0 0
        %961 = vmatprep.subr.bf16.mxu0 0
        %962 = vmatpush1.bf16.msra.mxu0 0
        %963 = vmatprep.subr.bf16.mxu0 0
        %964 = vmatpush1.bf16.msra.mxu0 0
        %965 = vmatprep.subr.bf16.mxu0 0
        %966 = vmatpush1.bf16.msra.mxu0 0
        %967 = vmatprep.subr.bf16.mxu0 0
        %968 = vmatpush1.bf16.msra.mxu0 0
        %969 = vmatprep.subr.bf16.mxu0 0
        %970 = vmatpush1.bf16.msra.mxu0 0
        %971 = vmatprep.subr.bf16.mxu0 0
        %972 = vmatpush1.bf16.msra.mxu0 0
        %973 = vmatprep.subr.bf16.mxu0 0
        %974 = vmatpush1.bf16.msra.mxu0 0
        %975 = vmatprep.subr.bf16.mxu0 0
        %976 = vmatpush1.bf16.msra.mxu0 0
        %977 = vmatprep.subr.bf16.mxu0 0
        %978 = vmatpush1.bf16.msra.mxu0 0
        %979 = vmatprep.subr.bf16.mxu0 0
        %980 = vmatpush1.bf16.msra.mxu0 0
        %981 = vmatprep.mubr.bf16.mxu0 0
        %982 = vmatmul.mubr.bf16.gmra.mrb[0].mxu0 %v897
        %v983 = vpop.f32.mrb[0].mxu0
        %v984 = vadd.f32 0.0, %v983
        %v985 = vpop.f32.mrb[0].mxu0
        %v986 = vpop.f32.mrb[0].mxu0
        %v987 = vpop.f32.mrb[0].mxu0
        %988 = vdwg.mxu0
        %v989 = vadd.f32 %v882, %v943
        %v990 = vadd.f32 %v883, %v945
        %v991 = vadd.f32 %v884, %v984
        %s992 = scalar_lea.vmem %s1, 28
        %v993 = vld [vmem:[%s992] sm:$0xf]
        %994 = vrot.lane.b32.xlu0 %v251, 91
        %v995 = vpop.permute.xlu0 %994
        %996 = vrot.lane.b32.xlu0 %v259, 91
        %v997 = vpop.permute.xlu0 %996
        %998 = vrot.lane.b32.xlu0 %v258, 91
        %v999 = vpop.permute.xlu0 %998
        %vm1000 = vcmask 744448
        %v1001 = vsel %vm1000, %v995, %v997
        %v1002 = vsel %vm1000, %v997, %v999
        %v1004 = vsel %vm269, %v993, 0
        %v1007 = vsel %vm273, %v1001, 0
        %v1010 = vsel %vm273, %v1002, 0
        %v1013 = vsel %vm273, %v999, 0
        %1015 = vmatprep.subr.bf16.mxu0 %v1010
        %1016 = vmatpush1.bf16.msra.mxu0 %v1007
        %1017 = vmatprep.subr.bf16.mxu0 0
        %1018 = vmatpush1.bf16.msra.mxu0 0
        %1019 = vmatprep.subr.bf16.mxu0 0
        %1020 = vmatpush1.bf16.msra.mxu0 0
        %1021 = vmatprep.subr.bf16.mxu0 0
        %1022 = vmatpush1.bf16.msra.mxu0 0
        %1023 = vmatprep.subr.bf16.mxu0 0
        %1024 = vmatpush1.bf16.msra.mxu0 0
        %1025 = vmatprep.subr.bf16.mxu0 0
        %1026 = vmatpush1.bf16.msra.mxu0 0
        %1027 = vmatprep.subr.bf16.mxu0 0
        %1028 = vmatpush1.bf16.msra.mxu0 0
        %1029 = vmatprep.subr.bf16.mxu0 0
        %1030 = vmatpush1.bf16.msra.mxu0 0
        %1031 = vmatprep.subr.bf16.mxu0 0
        %1032 = vmatpush1.bf16.msra.mxu0 0
        %1033 = vmatprep.subr.bf16.mxu0 0
        %1034 = vmatpush1.bf16.msra.mxu0 0
        %1035 = vmatprep.subr.bf16.mxu0 0
        %1036 = vmatpush1.bf16.msra.mxu0 0
        %1037 = vmatprep.subr.bf16.mxu0 0
        %1038 = vmatpush1.bf16.msra.mxu0 0
        %1039 = vmatprep.subr.bf16.mxu0 0
        %1040 = vmatpush1.bf16.msra.mxu0 0
        %1041 = vmatprep.subr.bf16.mxu0 0
        %1042 = vmatpush1.bf16.msra.mxu0 0
        %1043 = vmatprep.subr.bf16.mxu0 0
        %1044 = vmatpush1.bf16.msra.mxu0 0
        %1045 = vmatprep.subr.bf16.mxu0 0
        %1046 = vmatpush1.bf16.msra.mxu0 0
        %1047 = vmatprep.mubr.bf16.mxu0 0
        %1048 = vmatmul.mubr.bf16.gmra.mrb[0].mxu0 %v1004
        %v1049 = vpop.f32.mrb[0].mxu0
        %v1050 = vadd.f32 0.0, %v1049
        %v1051 = vpop.f32.mrb[0].mxu0
        %v1052 = vadd.f32 0.0, %v1051
        %v1053 = vpop.f32.mrb[0].mxu0
        %v1054 = vpop.f32.mrb[0].mxu0
        %1055 = vdwg.mxu0
        %1056 = vmatprep.subr.bf16.mxu0 0
        %1057 = vmatpush1.bf16.msra.mxu0 %v1013
        %1058 = vmatprep.subr.bf16.mxu0 0
        %1059 = vmatpush1.bf16.msra.mxu0 0
        %1060 = vmatprep.subr.bf16.mxu0 0
        %1061 = vmatpush1.bf16.msra.mxu0 0
        %1062 = vmatprep.subr.bf16.mxu0 0
        %1063 = vmatpush1.bf16.msra.mxu0 0
        %1064 = vmatprep.subr.bf16.mxu0 0
        %1065 = vmatpush1.bf16.msra.mxu0 0
        %1066 = vmatprep.subr.bf16.mxu0 0
        %1067 = vmatpush1.bf16.msra.mxu0 0
        %1068 = vmatprep.subr.bf16.mxu0 0
        %1069 = vmatpush1.bf16.msra.mxu0 0
        %1070 = vmatprep.subr.bf16.mxu0 0
        %1071 = vmatpush1.bf16.msra.mxu0 0
        %1072 = vmatprep.subr.bf16.mxu0 0
        %1073 = vmatpush1.bf16.msra.mxu0 0
        %1074 = vmatprep.subr.bf16.mxu0 0
        %1075 = vmatpush1.bf16.msra.mxu0 0
        %1076 = vmatprep.subr.bf16.mxu0 0
        %1077 = vmatpush1.bf16.msra.mxu0 0
        %1078 = vmatprep.subr.bf16.mxu0 0
        %1079 = vmatpush1.bf16.msra.mxu0 0
        %1080 = vmatprep.subr.bf16.mxu0 0
        %1081 = vmatpush1.bf16.msra.mxu0 0
        %1082 = vmatprep.subr.bf16.mxu0 0
        %1083 = vmatpush1.bf16.msra.mxu0 0
        %1084 = vmatprep.subr.bf16.mxu0 0
        %1085 = vmatpush1.bf16.msra.mxu0 0
        %1086 = vmatprep.subr.bf16.mxu0 0
        %1087 = vmatpush1.bf16.msra.mxu0 0
        %1088 = vmatprep.mubr.bf16.mxu0 0
        %1089 = vmatmul.mubr.bf16.gmra.mrb[0].mxu0 %v1004
        %v1090 = vpop.f32.mrb[0].mxu0
        %v1091 = vadd.f32 0.0, %v1090
        %v1092 = vpop.f32.mrb[0].mxu0
        %v1093 = vpop.f32.mrb[0].mxu0
        %v1094 = vpop.f32.mrb[0].mxu0
        %1095 = vdwg.mxu0
        %v1096 = vadd.f32 %v989, %v1050
        %v1097 = vadd.f32 %v990, %v1052
        %v1098 = vadd.f32 %v991, %v1091
        %s1099 = scalar_lea.vmem %s1, 32
        %v1100 = vld [vmem:[%s1099] sm:$0xf]
        %1101 = vrot.lane.b32.xlu0 %v251, 90
        %v1102 = vpop.permute.xlu0 %1101
        %1103 = vrot.lane.b32.xlu0 %v259, 90
        %v1104 = vpop.permute.xlu0 %1103
        %1105 = vrot.lane.b32.xlu0 %v258, 90
        %v1106 = vpop.permute.xlu0 %1105
        %vm1107 = vcmask 736256
        %v1108 = vsel %vm1107, %v1102, %v1104
        %v1109 = vsel %vm1107, %v1104, %v1106
        %v1111 = vsel %vm269, %v1100, 0
        %v1114 = vsel %vm273, %v1108, 0
        %v1117 = vsel %vm273, %v1109, 0
        %v1120 = vsel %vm273, %v1106, 0
        %1122 = vmatprep.subr.bf16.mxu0 %v1117
        %1123 = vmatpush1.bf16.msra.mxu0 %v1114
        %1124 = vmatprep.subr.bf16.mxu0 0
        %1125 = vmatpush1.bf16.msra.mxu0 0
        %1126 = vmatprep.subr.bf16.mxu0 0
        %1127 = vmatpush1.bf16.msra.mxu0 0
        %1128 = vmatprep.subr.bf16.mxu0 0
        %1129 = vmatpush1.bf16.msra.mxu0 0
        %1130 = vmatprep.subr.bf16.mxu0 0
        %1131 = vmatpush1.bf16.msra.mxu0 0
        %1132 = vmatprep.subr.bf16.mxu0 0
        %1133 = vmatpush1.bf16.msra.mxu0 0
        %1134 = vmatprep.subr.bf16.mxu0 0
        %1135 = vmatpush1.bf16.msra.mxu0 0
        %1136 = vmatprep.subr.bf16.mxu0 0
        %1137 = vmatpush1.bf16.msra.mxu0 0
        %1138 = vmatprep.subr.bf16.mxu0 0
        %1139 = vmatpush1.bf16.msra.mxu0 0
        %1140 = vmatprep.subr.bf16.mxu0 0
        %1141 = vmatpush1.bf16.msra.mxu0 0
        %1142 = vmatprep.subr.bf16.mxu0 0
        %1143 = vmatpush1.bf16.msra.mxu0 0
        %1144 = vmatprep.subr.bf16.mxu0 0
        %1145 = vmatpush1.bf16.msra.mxu0 0
        %1146 = vmatprep.subr.bf16.mxu0 0
        %1147 = vmatpush1.bf16.msra.mxu0 0
        %1148 = vmatprep.subr.bf16.mxu0 0
        %1149 = vmatpush1.bf16.msra.mxu0 0
        %1150 = vmatprep.subr.bf16.mxu0 0
        %1151 = vmatpush1.bf16.msra.mxu0 0
        %1152 = vmatprep.subr.bf16.mxu0 0
        %1153 = vmatpush1.bf16.msra.mxu0 0
        %1154 = vmatprep.mubr.bf16.mxu0 0
        %1155 = vmatmul.mubr.bf16.gmra.mrb[0].mxu0 %v1111
        %v1156 = vpop.f32.mrb[0].mxu0
        %v1157 = vadd.f32 0.0, %v1156
        %v1158 = vpop.f32.mrb[0].mxu0
        %v1159 = vadd.f32 0.0, %v1158
        %v1160 = vpop.f32.mrb[0].mxu0
        %v1161 = vpop.f32.mrb[0].mxu0
        %1162 = vdwg.mxu0
        %1163 = vmatprep.subr.bf16.mxu0 0
        %1164 = vmatpush1.bf16.msra.mxu0 %v1120
        %1165 = vmatprep.subr.bf16.mxu0 0
        %1166 = vmatpush1.bf16.msra.mxu0 0
        %1167 = vmatprep.subr.bf16.mxu0 0
        %1168 = vmatpush1.bf16.msra.mxu0 0
        %1169 = vmatprep.subr.bf16.mxu0 0
        %1170 = vmatpush1.bf16.msra.mxu0 0
        %1171 = vmatprep.subr.bf16.mxu0 0
        %1172 = vmatpush1.bf16.msra.mxu0 0
        %1173 = vmatprep.subr.bf16.mxu0 0
        %1174 = vmatpush1.bf16.msra.mxu0 0
        %1175 = vmatprep.subr.bf16.mxu0 0
        %1176 = vmatpush1.bf16.msra.mxu0 0
        %1177 = vmatprep.subr.bf16.mxu0 0
        %1178 = vmatpush1.bf16.msra.mxu0 0
        %1179 = vmatprep.subr.bf16.mxu0 0
        %1180 = vmatpush1.bf16.msra.mxu0 0
        %1181 = vmatprep.subr.bf16.mxu0 0
        %1182 = vmatpush1.bf16.msra.mxu0 0
        %1183 = vmatprep.subr.bf16.mxu0 0
        %1184 = vmatpush1.bf16.msra.mxu0 0
        %1185 = vmatprep.subr.bf16.mxu0 0
        %1186 = vmatpush1.bf16.msra.mxu0 0
        %1187 = vmatprep.subr.bf16.mxu0 0
        %1188 = vmatpush1.bf16.msra.mxu0 0
        %1189 = vmatprep.subr.bf16.mxu0 0
        %1190 = vmatpush1.bf16.msra.mxu0 0
        %1191 = vmatprep.subr.bf16.mxu0 0
        %1192 = vmatpush1.bf16.msra.mxu0 0
        %1193 = vmatprep.subr.bf16.mxu0 0
        %1194 = vmatpush1.bf16.msra.mxu0 0
        %1195 = vmatprep.mubr.bf16.mxu0 0
        %1196 = vmatmul.mubr.bf16.gmra.mrb[0].mxu0 %v1111
        %v1197 = vpop.f32.mrb[0].mxu0
        %v1198 = vadd.f32 0.0, %v1197
        %v1199 = vpop.f32.mrb[0].mxu0
        %v1200 = vpop.f32.mrb[0].mxu0
        %v1201 = vpop.f32.mrb[0].mxu0
        %1202 = vdwg.mxu0
        %v1203 = vadd.f32 %v1096, %v1157
        %v1204 = vadd.f32 %v1097, %v1159
        %v1205 = vadd.f32 %v1098, %v1198
        %p1206 = scmp.eq.s32.totalorder %s23, 0
        %p1207 = scmp.eq.s32.totalorder %s24, 0
        %p1208 = pnand %p1206, %p1207
        %p1209 = pneg %p1208
        // Predicated region
        $region41: #{tpu_custom_call.1} parent=39 // pred_check
          _
        $region42: #{tpu_custom_call.1} parent=39 // pred_check_branch
          %1211 = sbr.rel (%p1208) target = $region44
        $region43: #{tpu_custom_call.1} parent=39 // pred_region
          %vm1212 = vcmask 7168
          %1213 = vst.msk [vmem:[#allocation2] sm:$0xff] %vm1212, 0.0
          %1214 = vst.msk [vmem:[#allocation3] sm:$0xff] %vm1212, 0.0
        $region44: #{tpu_custom_call.1} parent=39 // pred_fallthru
          _
        // Predicated region
        $region45: #{tpu_custom_call.1} parent=39 // pred_check
          %p1215 = pneg %p1206
        $region46: #{tpu_custom_call.1} parent=39 // pred_check_branch
          %1217 = sbr.rel (%p1215) target = $region48
        $region47: #{tpu_custom_call.1} parent=39 // pred_region
          %v1218 = vld [vmem:[%s4] sm:$0x7]
          %v1220 = vlaneseq
          %v1221 = vshrl.u32 %v1220, 7
          %v1222 = vsub.s32 0, %v1221
          %v1223 = vrot.slane %v1218, %v1222
          %v1224 = vlaneseq
          %v1225 = vshrl.u32 %v1224, 7
          %v1226 = vsub.s32 1, %v1225
          %v1227 = vrot.slane %v1218, %v1226
          %v1228 = vlaneseq
          %v1229 = vshrl.u32 %v1228, 7
          %v1230 = vsub.s32 2, %v1229
          %v1231 = vrot.slane %v1218, %v1230
          %v1235 = vmul.f32 %v1203, %v1223
          %v1236 = vmul.f32 %v1204, %v1227
          %v1237 = vmul.f32 %v1205, %v1231
          %v1238 = vld [vmem:[#allocation2] sm:$0xff]
          %v1239 = vadd.f32 %v1235, %v1236
          %vm1240 = vcmask 261120
          %v1241 = vsel %vm1240, %v1237, 0.0
          %v1242 = vadd.f32 %v1239, %v1241
          %1243 = vadd.xlane.f32.xlu0 %v1242
          %v1244 = vpop.xlane.xlu0 %1243
          %v1245 = vadd.f32 %v1238, %v1244
          %vm1246 = vcmask 7168
          %1247 = vst.msk [vmem:[#allocation2] sm:$0xff] %vm1246, %v1245
          %v1248 = vld [vmem:[#allocation3] sm:$0xff]
          %v1249 = vmul.f32 %v1235, %v1235
          %v1250 = vmul.f32 %v1236, %v1236
          %v1251 = vmul.f32 %v1237, %v1237
          %v1252 = vadd.f32 %v1249, %v1250
          %v1253 = vsel %vm1240, %v1251, 0.0
          %v1254 = vadd.f32 %v1252, %v1253
          %1255 = vadd.xlane.f32.xlu0 %v1254
          %v1256 = vpop.xlane.xlu0 %1255
          %v1257 = vadd.f32 %v1248, %v1256
          %1258 = vst.msk [vmem:[#allocation3] sm:$0xff] %vm1246, %v1257
        $region48: #{tpu_custom_call.1} parent=39 // pred_fallthru
          _
        %p1259 = scmp.eq.s32.totalorder %s23, 1
        // Predicated region
        $region49: #{tpu_custom_call.1} parent=39 // pred_check
          %p1260 = pneg %p1259
        $region50: #{tpu_custom_call.1} parent=39 // pred_check_branch
          %1262 = sbr.rel (%p1260) target = $region52
        $region51: #{tpu_custom_call.1} parent=39 // pred_region
          %v1263 = vld [vmem:[#allocation2] sm:$0xff]
          %v1264 = vmul.f32 %v1263, 0.001953125
          %v1265 = vld [vmem:[#allocation3] sm:$0xff]
          %v1266 = vmul.f32 %v1265, 0.001953125
          %v1267 = vmul.f32 %v1264, %v1264
          %v1268 = vsub.f32 %v1266, %v1267
          %v1269 = vmax.f32 %v1268, 0.0
          %v1270 = vld [vmem:[%s2] sm:$0xff]
          %v1271 = vadd.f32 %v1269, 1e-05
          %v1272 = vrsqrt.pop %v1271
          %v1273 = vmul.f32 %v1270, %v1272
          %v1274 = vld [vmem:[%s3] sm:$0xff]
          %v1275 = vmul.f32 %v1264, %v1273
          %v1276 = vsub.f32 %v1274, %v1275
          %1278 = vset.pattern.permute.xlu0 0
          %1279 = vperm.xlu0 %1278, %v1273
          %v1280 = vpop.permute.xlu0 %1279
          %v1282 = vmul.f32 %v1203, %v1280
          %v1283 = vmul.f32 %v1204, %v1280
          %v1284 = vmul.f32 %v1205, %v1280
          %1286 = vset.pattern.permute.xlu0 0
          %1287 = vperm.xlu0 %1286, %v1276
          %v1288 = vpop.permute.xlu0 %1287
          %v1290 = vadd.f32 %v1282, %v1288
          %v1291 = vadd.f32 %v1283, %v1288
          %v1292 = vadd.f32 %v1284, %v1288
          %v1293 = vmax.f32 %v1290, 0.0
          %v1294 = vmax.f32 %v1291, 0.0
          %v1295 = vmax.f32 %v1292, 0.0
          %1296 = vst [vmem:[%s231] sm:$0xff] %v1293
          %1297 = vst [vmem:[%s231 + $0x8] sm:$0xff] %v1294
          %vm1298 = vcmask 261120
          %1299 = vst.msk [vmem:[%s231 + $0x10] sm:$0xff] %vm1298, %v1295
        $region52: #{tpu_custom_call.1} parent=39 // pred_fallthru
          _
        %s1300 = sand.u32 %s151, 1
        %s1301 = scalar_lea.sflag [#allocation5], %s1300
        %s1302 = sand.u32 %s151, 1
        %s1303 = smul.addr %s1302, 24
        %s1304 = scalar_lea.vmem [#allocation4], %s1303
        // Predicated region
        $region53: #{tpu_custom_call.1} parent=39 // pred_check
          %p1305 = pneg %p161
        $region54: #{tpu_custom_call.1} parent=39 // pred_check_branch
          %1307 = sbr.rel (%p1305) target = $region56
        $region55: #{tpu_custom_call.1} parent=39 // pred_region
          %s1308 = smul.u32 %s23, %s24
          %s1310 = ssub.s32 384, 384
          %1311 = vsyncadd %s1301, %s1310
          %s1312 = smul.addr %s1308, 3
          %s1313 = smul.addr %s1312, 128
          %s1314 = scalar_lea.hbm %s5, %s1313
          %s1316 = sshll.u32 %s1304, 4
          %s1317 = int_to_ptr.vmem [resolvable:$true] %s1316
          %1319 = dma.vmem_to_hbm [thread:$0]  %s1317, 384, %s1314, %s1301
        $region56: #{tpu_custom_call.1} parent=39 // pred_fallthru
          _
      $region40: #{tpu_custom_call.1} parent=5 // pred_fallthru
        _
      %p1320 = scmp.le.s32.totalorder 2, %s14
      // Predicated region
      $region57: #{tpu_custom_call.1} parent=5 // pred_check
        %p1321 = pneg %p1320
      $region58: #{tpu_custom_call.1} parent=5 // pred_check_branch
        %1323 = sbr.rel (%p1321) target = $region60
      $region59: #{tpu_custom_call.1} parent=5 // pred_region
        %s1324 = ssub.s32 %s14, 2
        // Predicated region
        $region61: #{tpu_custom_call.1} parent=59 // pred_check
          %p1325 = pneg %p167
        $region62: #{tpu_custom_call.1} parent=59 // pred_check_branch
          %1327 = sbr.rel (%p1325) target = $region64
        $region63: #{tpu_custom_call.1} parent=59 // pred_region
          %s1328 = sand.u32 %s152, 1
          %s1329 = scalar_lea.sflag [#allocation5], %s1328
          %s1330 = sand.u32 %s152, 1
          %s1331 = smul.addr %s1330, 24
          %s1332 = scalar_lea.vmem [#allocation4], %s1331
          %1333 = dma.done %s1329, 384
        $region64: #{tpu_custom_call.1} parent=59 // pred_fallthru
          _
      $region60: #{tpu_custom_call.1} parent=5 // pred_fallthru
        _
    $region6: #{tpu_custom_call.1} parent=1 // loop_footer
      %s18 = sadd.s32 1, %s14
    $region7: #{tpu_custom_call.1} parent=1 // loop_footer_branch
      %13 = sbr.rel target = $region3
    $region8: #{tpu_custom_call.1} parent=1 // loop_exit
      _
    %1334 = vsyncpa [#allocation5], 1
    %s1335 = scalar_lea.sflag [#allocation5], 1
    %1336 = vsyncpa %s1335, 1

</llo_original>
